<compile_context>
chip_gen: v6e
topology: v6e:2x2x1
jax: 0.10.0
libtpu: 0.0.40
codegen_flags: <defaults>
</compile_context>

<pallas_src>
import numpy as np
import jax
import jax.numpy as jnp
from jax import lax
from jax.experimental import pallas as pl
from jax.experimental.pallas import tpu as pltpu

IN_DIM = 32
MEM_DIM = 32


# ----------------------------------------------------------------------------
# Fused wavefront kernel: one grid step == one group of trees
# ----------------------------------------------------------------------------
def tree_wavefront_kernel(num_levels_ref,                 # SMEM (G,) int32 (scalar prefetch)
                          child_idx_ref,                  # (D, 2W, 1) int32: [left|right] slots
                          root_idx_ref,                   # (B, 1) int32: per-tree root slot
                          leaf_x_ref,                     # (L, IN) leaf embeddings
                          w_leaf_ref, b_leaf_ref,         # fused leaf [cx|ox]
                          w_ih_ref, w_hh_ref, b_lstm_ref, # child nn.LSTM
                          wh_w_ref, wh_b_ref,             # attention Wh
                          us_w_ref, us_b_ref,             # attention Us
                          map_w_ref, map_b_ref,           # attention map_alpha
                          w_att_ref,                      # attention vector w (1, M)
                          wg_lr_ref, bg_ref,              # fused 8 gate linears (2M,4M),(1,4M)
                          out_ref,                        # (B, 2M) per-tree root [c|h]
                          state_ref):                     # VMEM scratch (N, 2M)
    D = child_idx_ref.shape[0]
    W = child_idx_ref.shape[1] // 2
    L = leaf_x_ref.shape[0]
    N = state_ref.shape[0]
    B = out_ref.shape[0]
    M = out_ref.shape[1] // 2
    n_lvls = num_levels_ref[pl.program_id(0)]

    # ---- all leaves of the group: one batched matmul + one bulk store ----
    leaf_lin = jnp.dot(leaf_x_ref[...], w_leaf_ref[...],
                       preferred_element_type=jnp.float32) + b_leaf_ref[...]
    c_leaf = leaf_lin[:, :M]
    h_leaf = jax.nn.sigmoid(leaf_lin[:, M:]) * jnp.tanh(c_leaf)
    state_ref[0:L, :] = jnp.concatenate([c_leaf, h_leaf], axis=1)
    # zero the internal-node slots so the one-hot gather (0 * x summed over all
    # slots) can never touch uninitialised VMEM (0 * NaN would poison the sum)
    state_ref[L:N, :] = jnp.zeros((N - L, 2 * M), jnp.float32)

    # ---- weights loaded once; loop-invariant bias broadcasts hoisted ----
    w_ih, w_hh = w_ih_ref[...], w_hh_ref[...]
    wh_w, us_w, map_w = wh_w_ref[...], us_w_ref[...], map_w_ref[...]
    wg_lr = wg_lr_ref[...]
    b_lstm2 = jnp.broadcast_to(b_lstm_ref[...], (2 * W, 4 * M))
    wh_b2 = jnp.broadcast_to(wh_b_ref[...], (2 * W, M))
    map_b2 = jnp.broadcast_to(map_b_ref[...], (2 * W, M))
    us_b1 = jnp.broadcast_to(us_b_ref[...], (W, M))
    bg1 = jnp.broadcast_to(bg_ref[...], (W, 4 * M))
    w_att1 = jnp.broadcast_to(w_att_ref[...], (W, M))
    child_idx = child_idx_ref[...]                              # (D, 2W, 1)

    lane_iota = lax.broadcasted_iota(jnp.int32, (2 * W, N), 1)  # node-slot ids on lanes

    # ---- level-order wavefront over internal nodes (all same-level nodes batched) ----
    # TODO(synk): for very deep chain-like trees replace this bucketed static unroll
    # with a dynamic pl.loop to bound code size.
    for l in range(D):
        @pl.when(l < n_lvls)
        def _level(l=l):
            idx = child_idx[l]                                   # (2W, 1), -1 = padding
            onehot = (lane_iota == idx).astype(jnp.float32)      # (2W, N)
            gathered = jnp.dot(onehot, state_ref[...],
                               preferred_element_type=jnp.float32)   # (2W, 2M)
            lc, rc = gathered[:W, :M], gathered[W:, :M]
            ch_h = gathered[:, M:]                               # (2W, M) = [lh ; rh]
            lh, rh = ch_h[:W], ch_h[W:]

            # child nn.LSTM over the 2-step sequence [lh, rh] with zero init
            # (step-0 h=c=0 -> its w_hh matmul is dropped); gate order [i,f,g,o]
            in_proj = jnp.dot(ch_h, w_ih, preferred_element_type=jnp.float32) + b_lstm2
            g0 = in_proj[:W]
            s0, t0 = jax.nn.sigmoid(g0), jnp.tanh(g0)            # activate full (.,128) vregs
            c0 = s0[:, 0 * M:1 * M] * t0[:, 2 * M:3 * M]
            h0 = s0[:, 3 * M:4 * M] * jnp.tanh(c0)
            g1 = in_proj[W:] + jnp.dot(h0, w_hh, preferred_element_type=jnp.float32)
            s1, t1 = jax.nn.sigmoid(g1), jnp.tanh(g1)
            c1 = s1[:, 1 * M:2 * M] * c0 + s1[:, 0 * M:1 * M] * t1[:, 2 * M:3 * M]
            S = s1[:, 3 * M:4 * M] * jnp.tanh(c1)                # hidden h_n, (W, M)

            # attention over the two children (raw scores, no exp — as in the reference)
            s_proj = jnp.dot(S, us_w, preferred_element_type=jnp.float32) + us_b1
            wh_proj = jnp.dot(ch_h, wh_w, preferred_element_type=jnp.float32) + wh_b2
            m_l = jnp.tanh(wh_proj[:W] + s_proj)
            m_r = jnp.tanh(wh_proj[W:] + s_proj)
            e_l = jnp.sum(w_att1 * m_l, axis=1, keepdims=True)   # (W, 1)
            e_r = jnp.sum(w_att1 * m_r, axis=1, keepdims=True)
            denom = e_l + e_r                                    # exact divide (off MXU path)
            scaled = jnp.concatenate([(e_l / denom) * lh, (e_r / denom) * rh], axis=0)
            mapped = jnp.tanh(jnp.dot(scaled, map_w,
                                      preferred_element_type=jnp.float32) + map_b2)

            # fused composer gates: one (W,2M)@(2M,4M) matmul, gate order [i,lf,rf,u]
            alpha_lr = jnp.concatenate([mapped[:W], mapped[W:]], axis=1)   # (W, 2M)
            gates = jnp.dot(alpha_lr, wg_lr, preferred_element_type=jnp.float32) + bg1
            sg, tg = jax.nn.sigmoid(gates), jnp.tanh(gates)
            c = (sg[:, 0 * M:1 * M] * tg[:, 3 * M:4 * M]
                 + sg[:, 1 * M:2 * M] * lc + sg[:, 2 * M:3 * M] * rc)
            h = jnp.tanh(c)
            new_ch = jnp.concatenate([c, h], axis=1)             # (W, 2M)

            # keep padded wavefront slots finite (0) so later gathers stay NaN-free
            valid = idx[:W] >= 0                                 # (W, 1)
            state_ref[L + l * W:L + (l + 1) * W, :] = jnp.where(valid, new_ch, 0.0)

    # ---- per-tree root read-out: one-hot gather of the B root slots ----
    root_iota = lax.broadcasted_iota(jnp.int32, (B, N), 1)
    root_onehot = (root_iota == root_idx_ref[...]).astype(jnp.float32)     # (B, N)
    out_ref[...] = jnp.dot(root_onehot, state_ref[...],
                           preferred_element_type=jnp.float32)


# ----------------------------------------------------------------------------
# Host wrapper: one pallas_call for the whole batch, grid over tree-groups
# ----------------------------------------------------------------------------
@jax.jit
def _forward_groups(num_levels, child_idx, root_idx, leaf_word_idx, embs, params):
    G, D, twoW, _ = child_idx.shape
    W = twoW // 2
    _, L_pad = leaf_word_idx.shape
    B = root_idx.shape[1]
    M = MEM_DIM
    N_pad = L_pad + D * W

    leaf_x = embs[leaf_word_idx].astype(jnp.float32)             # (G, L_pad, IN_DIM)
    wg_lr = jnp.concatenate([params["wg_left"], params["wg_right"]], axis=0)  # (2M, 4M)

    def full2d(shape):  # whole weight resident in VMEM; constant block index -> DMA'd once
        return pl.BlockSpec(shape, lambda g, nl: (0, 0))

    grid_spec = pltpu.PrefetchScalarGridSpec(
        num_scalar_prefetch=1,                                   # num_levels -> SMEM
        grid=(G,),
        in_specs=[
            pl.BlockSpec((None, D, 2 * W, 1), lambda g, nl: (g, 0, 0, 0)),   # child_idx
            pl.BlockSpec((None, B, 1), lambda g, nl: (g, 0, 0)),             # root_idx
            pl.BlockSpec((None, L_pad, IN_DIM), lambda g, nl: (g, 0, 0)),    # leaf_x
            full2d((IN_DIM, 2 * M)), full2d((1, 2 * M)),                     # leaf [cx|ox]
            full2d((M, 4 * M)), full2d((M, 4 * M)), full2d((1, 4 * M)),      # child LSTM
            full2d((M, M)), full2d((1, M)),                                  # Wh
            full2d((M, M)), full2d((1, M)),                                  # Us
            full2d((M, M)), full2d((1, M)),                                  # map_alpha
            full2d((1, M)),                                                  # attention w
            full2d((2 * M, 4 * M)), full2d((1, 4 * M)),                      # fused gates
        ],
        out_specs=pl.BlockSpec((None, B, 2 * M), lambda g, nl: (g, 0, 0)),
        scratch_shapes=[pltpu.VMEM((N_pad, 2 * M), jnp.float32)],
    )
    out = pl.pallas_call(
        tree_wavefront_kernel,
        out_shape=jax.ShapeDtypeStruct((G, B, 2 * M), jnp.float32),
        grid_spec=grid_spec,
        compiler_params=pltpu.CompilerParams(
            dimension_semantics=("parallel",)),    # v7x: groups split across both TCs
    )(num_levels, child_idx, root_idx, leaf_x,
      params["w_leaf"], params["b_leaf"],
      params["w_ih"], params["w_hh"], params["b_lstm"],
      params["wh_w"], params["wh_b"], params["us_w"], params["us_b"],
      params["map_w"], params["map_b"], params["w_att"],
      wg_lr, params["bg"])
    return out[..., :M], out[..., M:]


# ----------------------------------------------------------------------------
# Host-side schedule building (no per-node math on host)
# ----------------------------------------------------------------------------
class Tree:
    def __init__(self, idx=None, children=()):
        self.idx = idx
        self.children = list(children)
        self.num_children = len(self.children)
        self.state = None


def _round_up(x, m):
    return ((x + m - 1) // m) * m


def _annotate(root):
    """Leaves get level 0; internal nodes level = 1 + max(child levels)."""
    leaves, internals = [], []

    def visit(n):
        if n.num_children == 0:
            n._level = 0
            leaves.append(n)
            return
        assert n.num_children == 2, "only strictly binary internal nodes are supported"
        for ch in n.children:
            visit(ch)
        n._level = 1 + max(ch._level for ch in n.children)
        internals.append(n)

    visit(root)
    return leaves, internals


def build_batched_schedule(trees, trees_per_group):
    """Level-order ("wavefront") schedule for a batch of trees.

    Slot layout per group: leaf slots [0, L_pad), then level-l internal nodes at
    [L_pad + (l-1)*W, L_pad + l*W).  Shapes are bucketed (mult-of-8 leaves/width,
    pow2 depth) so differing topologies reuse one compiled kernel; -1 marks padding.
    """
    assert len(trees) % trees_per_group == 0, "pad the tree batch to a full group"
    groups = [trees[i:i + trees_per_group] for i in range(0, len(trees), trees_per_group)]

    per_group, max_leaves, max_width, max_depth = [], 1, 1, 1
    for g_trees in groups:
        leaf_words, level_nodes = [], {}
        for t in g_trees:
            leaves, internals = _annotate(t)
            for lf in leaves:
                lf._slot = len(leaf_words)
                leaf_words.append(lf.idx - 1)        # word indices are 1-based
            for n in internals:
                level_nodes.setdefault(n._level, []).append(n)
        depth = max(level_nodes) if level_nodes else 1
        width = max(len(v) for v in level_nodes.values()) if level_nodes else 1
        per_group.append((g_trees, leaf_words, level_nodes))
        max_leaves = max(max_leaves, len(leaf_words))
        max_width = max(max_width, width)
        max_depth = max(max_depth, depth)

    L_pad = _round_up(max_leaves, 8)
    W = _round_up(max_width, 8)
    D = 1 << max(0, (max_depth - 1).bit_length())    # next power of two
    G, B = len(groups), trees_per_group

    leaf_word_idx = np.zeros((G, L_pad), np.int32)
    child_idx = np.full((G, D, 2 * W, 1), -1, np.int32)
    root_idx = np.zeros((G, B, 1), np.int32)
    num_levels = np.zeros((G,), np.int32)
    for gi, (g_trees, leaf_words, level_nodes) in enumerate(per_group):
        leaf_word_idx[gi, :len(leaf_words)] = leaf_words
        num_levels[gi] = max(level_nodes) if level_nodes else 0
        for lvl, nodes in sorted(level_nodes.items()):           # children already slotted
            for p, n in enumerate(nodes):
                n._slot = L_pad + (lvl - 1) * W + p
                child_idx[gi, lvl - 1, p, 0] = n.children[0]._slot
                child_idx[gi, lvl - 1, W + p, 0] = n.children[1]._slot
        for b, t in enumerate(g_trees):
            root_idx[gi, b, 0] = t._slot
    return (jnp.asarray(leaf_word_idx), jnp.asarray(child_idx),
            jnp.asarray(root_idx), jnp.asarray(num_levels))


def tree_lstm_forward(trees, embs, params, trees_per_group=2):
    """Forward pass for a batch of trees; sets tree.state=(c, h), returns [(c, h)]."""
    leaf_word_idx, child_idx, root_idx, num_levels = build_batched_schedule(
        trees, trees_per_group)
    c, h = _forward_groups(num_levels, child_idx, root_idx, leaf_word_idx, embs, params)
    out = []
    for i, t in enumerate(trees):
        g, b = divmod(i, trees_per_group)
        ci, hi = c[g, b:b + 1, :], h[g, b:b + 1, :]
        t.state = (ci, hi)
        out.append((ci, hi))
    return out


# ----------------------------------------------------------------------------
# Deterministic parameter init (synthetic; fused layouts documented above)
# ----------------------------------------------------------------------------
def init_params(key, in_dim, mem_dim):
    keys = iter(jax.random.split(key, 64))

    def uni(fan_in, shape):
        bound = 1.0 / np.sqrt(fan_in)
        return jax.random.uniform(next(keys), shape, jnp.float32, -bound, bound)

    cx_w, cx_b = uni(in_dim, (in_dim, mem_dim)), uni(in_dim, (1, mem_dim))
    ox_w, ox_b = uni(in_dim, (in_dim, mem_dim)), uni(in_dim, (1, mem_dim))
    w_leaf = jnp.concatenate([cx_w, ox_w], axis=1)
    b_leaf = jnp.concatenate([cx_b, ox_b], axis=1)

    w_ih = uni(mem_dim, (mem_dim, 4 * mem_dim))
    w_hh = uni(mem_dim, (mem_dim, 4 * mem_dim))
    b_lstm = uni(mem_dim, (1, 4 * mem_dim)) + uni(mem_dim, (1, 4 * mem_dim))

    wh_w, wh_b = uni(mem_dim, (mem_dim, mem_dim)), uni(mem_dim, (1, mem_dim))
    us_w, us_b = uni(mem_dim, (mem_dim, mem_dim)), uni(mem_dim, (1, mem_dim))
    map_w, map_b = uni(mem_dim, (mem_dim, mem_dim)), uni(mem_dim, (1, mem_dim))
    w_att = jax.random.normal(next(keys), (1, mem_dim), jnp.float32)

    gw = [uni(mem_dim, (mem_dim, mem_dim)) for _ in range(8)]
    gb = [uni(mem_dim, (1, mem_dim)) for _ in range(8)]
    wg_left = jnp.concatenate([gw[0], gw[2], gw[4], gw[6]], axis=1)
    wg_right = jnp.concatenate([gw[1], gw[3], gw[5], gw[7]], axis=1)
    bg = jnp.concatenate([gb[0] + gb[1], gb[2] + gb[3],
                          gb[4] + gb[5], gb[6] + gb[7]], axis=1)

    return {"w_leaf": w_leaf, "b_leaf": b_leaf,
            "w_ih": w_ih, "w_hh": w_hh, "b_lstm": b_lstm,
            "wh_w": wh_w, "wh_b": wh_b, "us_w": us_w, "us_b": us_b,
            "map_w": map_w, "map_b": map_b, "w_att": w_att,
            "wg_left": wg_left, "wg_right": wg_right, "bg": bg}


# ----------------------------------------------------------------------------
# Pure-JAX reference (mirrors the PyTorch module) for correctness checking
# ----------------------------------------------------------------------------
def _ref_leaf(x, p):
    lin = x @ p["w_leaf"] + p["b_leaf"]
    c = lin[:, :MEM_DIM]
    h = jax.nn.sigmoid(lin[:, MEM_DIM:]) * jnp.tanh(c)
    return c, h


def _ref_compose(lc, lh, rc, rh, p):
    M = MEM_DIM
    h = jnp.zeros((1, M), jnp.float32)
    cst = jnp.zeros((1, M), jnp.float32)
    for x_t in (lh, rh):
        g = x_t @ p["w_ih"] + h @ p["w_hh"] + p["b_lstm"]
        i = jax.nn.sigmoid(g[:, :M]); f = jax.nn.sigmoid(g[:, M:2 * M])
        gg = jnp.tanh(g[:, 2 * M:3 * M]); o = jax.nn.sigmoid(g[:, 3 * M:])
        cst = f * cst + i * gg
        h = o * jnp.tanh(cst)
    S = h
    s_proj = S @ p["us_w"] + p["us_b"]
    m_left = jnp.tanh(lh @ p["wh_w"] + p["wh_b"] + s_proj)
    m_right = jnp.tanh(rh @ p["wh_w"] + p["wh_b"] + s_proj)
    el = jnp.sum(p["w_att"] * m_left)
    er = jnp.sum(p["w_att"] * m_right)
    la, ra = el / (el + er), er / (el + er)
    left_alpha = jnp.tanh((la * lh) @ p["map_w"] + p["map_b"])
    right_alpha = jnp.tanh((ra * rh) @ p["map_w"] + p["map_b"])
    gates = left_alpha @ p["wg_left"] + right_alpha @ p["wg_right"] + p["bg"]
    i = jax.nn.sigmoid(gates[:, :M]); lf = jax.nn.sigmoid(gates[:, M:2 * M])
    rf = jax.nn.sigmoid(gates[:, 2 * M:3 * M]); u = jnp.tanh(gates[:, 3 * M:])
    c = i * u + lf * lc + rf * rc
    return c, jnp.tanh(c)


def _ref_tree(tree, embs, p):
    if tree.num_children == 0:
        return _ref_leaf(embs[tree.idx - 1][None, :], p)
    st = [_ref_tree(ch, embs, p) for ch in tree.children]
    (lc, lh), (rc, rh) = st[0], st[1]
    return _ref_compose(lc, lh, rc, rh, p)


# ----------------------------------------------------------------------------
if __name__ == "__main__":
    key = jax.random.PRNGKey(0)
    k_emb, k_par = jax.random.split(key)

    seq_len = 8
    embs = jax.random.normal(k_emb, (seq_len, IN_DIM), jnp.float32)
    params = init_params(k_par, IN_DIM, MEM_DIM)

    def leafs(*idx):
        return [Tree(i) for i in idx]

    # four small trees with differing topology (word indices are 1-based)
    l1, l2, l3, l4 = leafs(1, 2, 3, 4)
    t1 = Tree(children=(Tree(children=(l1, l2)), Tree(children=(l3, l4))))
    l5, l6, l7 = leafs(5, 6, 7)
    t2 = Tree(children=(Tree(children=(l5, l6)), l7))              # left-heavy
    m5, m6, m7 = leafs(5, 6, 7)
    t3 = Tree(children=(m5, Tree(children=(m6, m7))))              # right-heavy
    n8, n1, n2, n3 = leafs(8, 1, 2, 3)
    t4 = Tree(children=(Tree(children=(n8, n1)), Tree(children=(n2, n3))))
    trees = [t1, t2, t3, t4]

    states = tree_lstm_forward(trees, embs, params, trees_per_group=2)
    jax.block_until_ready(states)

    # correctness vs. pure-JAX reference (tolerance covers MXU f32 rounding and the
    # un-exponentiated attention normalisation of the reference model)
    for t, (c, h) in zip(trees, states):
        assert c.shape == (1, MEM_DIM) and h.shape == (1, MEM_DIM)
        assert bool(jnp.all(jnp.isfinite(c))) and bool(jnp.all(jnp.isfinite(h)))
        c_ref, h_ref = _ref_tree(t, embs, params)
        np.testing.assert_allclose(np.asarray(c), np.asarray(c_ref), rtol=2e-2, atol=2e-2)
        np.testing.assert_allclose(np.asarray(h), np.asarray(h_ref), rtol=2e-2, atol=2e-2)

    print("KERNEL_OK")
</pallas_src>

<mosaic_0001>
module attributes {stable_mosaic.version = 11 : i64} {
  func.func @tree_wavefront_kernel(%arg0: i32, %arg1: memref<2xi32, #tpu.memory_space<smem>>, %arg2: memref<1x2x16x1xi32, #tpu.memory_space<vmem>>, %arg3: memref<1x2x1xi32, #tpu.memory_space<vmem>>, %arg4: memref<1x8x32xf32, #tpu.memory_space<vmem>>, %arg5: memref<32x64xf32, #tpu.memory_space<vmem>>, %arg6: memref<1x64xf32, #tpu.memory_space<vmem>>, %arg7: memref<32x128xf32, #tpu.memory_space<vmem>>, %arg8: memref<32x128xf32, #tpu.memory_space<vmem>>, %arg9: memref<1x128xf32, #tpu.memory_space<vmem>>, %arg10: memref<32x32xf32, #tpu.memory_space<vmem>>, %arg11: memref<1x32xf32, #tpu.memory_space<vmem>>, %arg12: memref<32x32xf32, #tpu.memory_space<vmem>>, %arg13: memref<1x32xf32, #tpu.memory_space<vmem>>, %arg14: memref<32x32xf32, #tpu.memory_space<vmem>>, %arg15: memref<1x32xf32, #tpu.memory_space<vmem>>, %arg16: memref<1x32xf32, #tpu.memory_space<vmem>>, %arg17: memref<64x128xf32, #tpu.memory_space<vmem>>, %arg18: memref<1x128xf32, #tpu.memory_space<vmem>>, %arg19: memref<1x2x64xf32, #tpu.memory_space<vmem>>, %arg20: memref<24x64xf32, #tpu.memory_space<vmem>>) attributes {dimension_semantics = [#tpu.dimension_semantics<parallel>], iteration_bounds = array<i64: 2>, scalar_prefetch = 1 : i64, scratch_operands = 1 : i64, tpu.core_type = #tpu.core_type<tc>, window_params = [{transform_indices = @transform_0, window_bounds = array<i64: 1, 2, 16, 1>}, {transform_indices = @transform_1, window_bounds = array<i64: 1, 2, 1>}, {transform_indices = @transform_2, window_bounds = array<i64: 1, 8, 32>}, {pipeline_mode = #tpu.pipeline_mode<synchronous>, transform_indices = @transform_3, window_bounds = array<i64: 32, 64>}, {pipeline_mode = #tpu.pipeline_mode<synchronous>, transform_indices = @transform_4, window_bounds = array<i64: 1, 64>}, {pipeline_mode = #tpu.pipeline_mode<synchronous>, transform_indices = @transform_5, window_bounds = array<i64: 32, 128>}, {pipeline_mode = #tpu.pipeline_mode<synchronous>, transform_indices = @transform_6, window_bounds = array<i64: 32, 128>}, {pipeline_mode = #tpu.pipeline_mode<synchronous>, transform_indices = @transform_7, window_bounds = array<i64: 1, 128>}, {pipeline_mode = #tpu.pipeline_mode<synchronous>, transform_indices = @transform_8, window_bounds = array<i64: 32, 32>}, {pipeline_mode = #tpu.pipeline_mode<synchronous>, transform_indices = @transform_9, window_bounds = array<i64: 1, 32>}, {pipeline_mode = #tpu.pipeline_mode<synchronous>, transform_indices = @transform_10, window_bounds = array<i64: 32, 32>}, {pipeline_mode = #tpu.pipeline_mode<synchronous>, transform_indices = @transform_11, window_bounds = array<i64: 1, 32>}, {pipeline_mode = #tpu.pipeline_mode<synchronous>, transform_indices = @transform_12, window_bounds = array<i64: 32, 32>}, {pipeline_mode = #tpu.pipeline_mode<synchronous>, transform_indices = @transform_13, window_bounds = array<i64: 1, 32>}, {pipeline_mode = #tpu.pipeline_mode<synchronous>, transform_indices = @transform_14, window_bounds = array<i64: 1, 32>}, {pipeline_mode = #tpu.pipeline_mode<synchronous>, transform_indices = @transform_15, window_bounds = array<i64: 64, 128>}, {pipeline_mode = #tpu.pipeline_mode<synchronous>, transform_indices = @transform_16, window_bounds = array<i64: 1, 128>}, {transform_indices = @transform_17, window_bounds = array<i64: 1, 2, 64>}]} {
    %0 = arith.index_cast %arg0 : i32 to index
    %1 = memref.load %arg1[%0] : memref<2xi32, #tpu.memory_space<smem>>
    %c0 = arith.constant 0 : index
    %c0_0 = arith.constant 0 : index
    %c0_1 = arith.constant 0 : index
    %2 = vector.load %arg4[%c0, %c0_0, %c0_1] : memref<1x8x32xf32, #tpu.memory_space<vmem>>, vector<1x8x32xf32>
    %3 = vector.shape_cast %2 : vector<1x8x32xf32> to vector<8x32xf32>
    %c0_2 = arith.constant 0 : index
    %c0_3 = arith.constant 0 : index
    %4 = vector.load %arg5[%c0_2, %c0_3] : memref<32x64xf32, #tpu.memory_space<vmem>>, vector<32x64xf32>
    %cst = arith.constant dense<0.000000e+00> : vector<8x64xf32>
    %5 = tpu.matmul %3, %4, %cst {dimension_numbers = #tpu.dot_dimension_numbers<[1], [0], [0], [1], [0, 0, 1, 1], [], []>} : vector<8x32xf32>, vector<32x64xf32>, vector<8x64xf32> -> vector<8x64xf32>
    %c0_4 = arith.constant 0 : index
    %c0_5 = arith.constant 0 : index
    %6 = vector.load %arg6[%c0_4, %c0_5] : memref<1x64xf32, #tpu.memory_space<vmem>>, vector<1x64xf32>
    %7 = vector.broadcast %6 : vector<1x64xf32> to vector<8x64xf32>
    %8 = arith.addf %5, %7 : vector<8x64xf32>
    %9 = vector.extract_strided_slice %8 {offsets = [0, 0], sizes = [8, 32], strides = [1, 1]} : vector<8x64xf32> to vector<8x32xf32>
    %10 = vector.extract_strided_slice %8 {offsets = [0, 32], sizes = [8, 32], strides = [1, 1]} : vector<8x64xf32> to vector<8x32xf32>
    %11 = arith.negf %10 : vector<8x32xf32>
    %12 = math.exp %11 : vector<8x32xf32>
    %cst_6 = arith.constant 1.000000e+00 : f32
    %13 = vector.broadcast %cst_6 : f32 to vector<8x32xf32>
    %14 = arith.addf %13, %12 : vector<8x32xf32>
    %15 = arith.divf %13, %14 : vector<8x32xf32>
    %16 = math.tanh %9 : vector<8x32xf32>
    %17 = arith.mulf %15, %16 : vector<8x32xf32>
    %18 = tpu.concatenate %9, %17 in 1 : vector<8x32xf32>, vector<8x32xf32> -> vector<8x64xf32>
    %c0_7 = arith.constant 0 : index
    %c0_8 = arith.constant 0 : index
    %19 = vector.load %arg20[%c0_7, %c0_8] : memref<24x64xf32, #tpu.memory_space<vmem>>, vector<8x64xf32>
    tpu.vector_store %arg20[%c0_7, %c0_8], %18 {strides = array<i32>} : memref<24x64xf32, #tpu.memory_space<vmem>>, vector<8x64xf32>,
    %cst_9 = arith.constant 0.000000e+00 : f32
    %20 = vector.broadcast %cst_9 : f32 to vector<16x64xf32>
    %c8 = arith.constant 8 : index
    %c0_10 = arith.constant 0 : index
    %21 = vector.load %arg20[%c8, %c0_10] : memref<24x64xf32, #tpu.memory_space<vmem>>, vector<16x64xf32>
    tpu.vector_store %arg20[%c8, %c0_10], %20 {strides = array<i32>} : memref<24x64xf32, #tpu.memory_space<vmem>>, vector<16x64xf32>,
    %c0_11 = arith.constant 0 : index
    %c0_12 = arith.constant 0 : index
    %22 = vector.load %arg7[%c0_11, %c0_12] : memref<32x128xf32, #tpu.memory_space<vmem>>, vector<32x128xf32>
    %c0_13 = arith.constant 0 : index
    %c0_14 = arith.constant 0 : index
    %23 = vector.load %arg8[%c0_13, %c0_14] : memref<32x128xf32, #tpu.memory_space<vmem>>, vector<32x128xf32>
    %c0_15 = arith.constant 0 : index
    %c0_16 = arith.constant 0 : index
    %24 = vector.load %arg10[%c0_15, %c0_16] : memref<32x32xf32, #tpu.memory_space<vmem>>, vector<32x32xf32>
    %c0_17 = arith.constant 0 : index
    %c0_18 = arith.constant 0 : index
    %25 = vector.load %arg12[%c0_17, %c0_18] : memref<32x32xf32, #tpu.memory_space<vmem>>, vector<32x32xf32>
    %c0_19 = arith.constant 0 : index
    %c0_20 = arith.constant 0 : index
    %26 = vector.load %arg14[%c0_19, %c0_20] : memref<32x32xf32, #tpu.memory_space<vmem>>, vector<32x32xf32>
    %c0_21 = arith.constant 0 : index
    %c0_22 = arith.constant 0 : index
    %27 = vector.load %arg17[%c0_21, %c0_22] : memref<64x128xf32, #tpu.memory_space<vmem>>, vector<64x128xf32>
    %c0_23 = arith.constant 0 : index
    %c0_24 = arith.constant 0 : index
    %28 = vector.load %arg9[%c0_23, %c0_24] : memref<1x128xf32, #tpu.memory_space<vmem>>, vector<1x128xf32>
    %29 = vector.shape_cast %28 : vector<1x128xf32> to vector<1x128xf32>
    %30 = vector.broadcast %29 : vector<1x128xf32> to vector<16x128xf32>
    %c0_25 = arith.constant 0 : index
    %c0_26 = arith.constant 0 : index
    %31 = vector.load %arg11[%c0_25, %c0_26] : memref<1x32xf32, #tpu.memory_space<vmem>>, vector<1x32xf32>
    %32 = vector.shape_cast %31 : vector<1x32xf32> to vector<1x32xf32>
    %33 = vector.broadcast %32 : vector<1x32xf32> to vector<16x32xf32>
    %c0_27 = arith.constant 0 : index
    %c0_28 = arith.constant 0 : index
    %34 = vector.load %arg15[%c0_27, %c0_28] : memref<1x32xf32, #tpu.memory_space<vmem>>, vector<1x32xf32>
    %35 = vector.shape_cast %34 : vector<1x32xf32> to vector<1x32xf32>
    %36 = vector.broadcast %35 : vector<1x32xf32> to vector<16x32xf32>
    %c0_29 = arith.constant 0 : index
    %c0_30 = arith.constant 0 : index
    %37 = vector.load %arg13[%c0_29, %c0_30] : memref<1x32xf32, #tpu.memory_space<vmem>>, vector<1x32xf32>
    %38 = vector.shape_cast %37 : vector<1x32xf32> to vector<1x32xf32>
    %39 = vector.broadcast %38 : vector<1x32xf32> to vector<8x32xf32>
    %c0_31 = arith.constant 0 : index
    %c0_32 = arith.constant 0 : index
    %40 = vector.load %arg18[%c0_31, %c0_32] : memref<1x128xf32, #tpu.memory_space<vmem>>, vector<1x128xf32>
    %41 = vector.shape_cast %40 : vector<1x128xf32> to vector<1x128xf32>
    %42 = vector.broadcast %41 : vector<1x128xf32> to vector<8x128xf32>
    %c0_33 = arith.constant 0 : index
    %c0_34 = arith.constant 0 : index
    %43 = vector.load %arg16[%c0_33, %c0_34] : memref<1x32xf32, #tpu.memory_space<vmem>>, vector<1x32xf32>
    %44 = vector.shape_cast %43 : vector<1x32xf32> to vector<1x32xf32>
    %45 = vector.broadcast %44 : vector<1x32xf32> to vector<8x32xf32>
    %c0_35 = arith.constant 0 : index
    %c0_36 = arith.constant 0 : index
    %c0_37 = arith.constant 0 : index
    %c0_38 = arith.constant 0 : index
    %46 = vector.load %arg2[%c0_35, %c0_36, %c0_37, %c0_38] : memref<1x2x16x1xi32, #tpu.memory_space<vmem>>, vector<1x2x16x1xi32>
    %47 = vector.shape_cast %46 : vector<1x2x16x1xi32> to vector<2x16x1xi32>
    %48 = tpu.iota {dimensions = array<i32: 1>} : vector<16x24xi32>
    %c0_i32 = arith.constant 0 : i32
    %49 = arith.cmpi sgt, %1, %c0_i32 : i32
    %50 = arith.extui %49 : i1 to i32
    %c0_i32_39 = arith.constant 0 : i32
    %51 = arith.cmpi ne, %50, %c0_i32_39 : i32
    scf.if %51 {
      %67 = vector.extract_strided_slice %47 {offsets = [0, 0, 0], sizes = [1, 16, 1], strides = [1, 1, 1]} : vector<2x16x1xi32> to vector<1x16x1xi32>
      %68 = vector.shape_cast %67 : vector<1x16x1xi32> to vector<16x1xi32>
      %69 = vector.broadcast %68 : vector<16x1xi32> to vector<16x24xi32>
      %70 = arith.cmpi eq, %48, %69 : vector<16x24xi32>
      %71 = arith.extui %70 : vector<16x24xi1> to vector<16x24xi32>
      %72 = arith.sitofp %71 : vector<16x24xi32> to vector<16x24xf32>
      %c0_50 = arith.constant 0 : index
      %c0_51 = arith.constant 0 : index
      %73 = vector.load %arg20[%c0_50, %c0_51] : memref<24x64xf32, #tpu.memory_space<vmem>>, vector<24x64xf32>
      %cst_52 = arith.constant dense<0.000000e+00> : vector<16x64xf32>
      %74 = tpu.matmul %72, %73, %cst_52 {dimension_numbers = #tpu.dot_dimension_numbers<[1], [0], [0], [1], [0, 0, 1, 1], [], []>} : vector<16x24xf32>, vector<24x64xf32>, vector<16x64xf32> -> vector<16x64xf32>
      %75 = vector.extract_strided_slice %74 {offsets = [0, 0], sizes = [8, 32], strides = [1, 1]} : vector<16x64xf32> to vector<8x32xf32>
      %76 = vector.extract_strided_slice %74 {offsets = [8, 0], sizes = [8, 32], strides = [1, 1]} : vector<16x64xf32> to vector<8x32xf32>
      %77 = vector.extract_strided_slice %74 {offsets = [0, 32], sizes = [16, 32], strides = [1, 1]} : vector<16x64xf32> to vector<16x32xf32>
      %78 = vector.extract_strided_slice %77 {offsets = [0, 0], sizes = [8, 32], strides = [1, 1]} : vector<16x32xf32> to vector<8x32xf32>
      %79 = vector.extract_strided_slice %77 {offsets = [8, 0], sizes = [8, 32], strides = [1, 1]} : vector<16x32xf32> to vector<8x32xf32>
      %cst_53 = arith.constant dense<0.000000e+00> : vector<16x128xf32>
      %80 = tpu.matmul %77, %22, %cst_53 {dimension_numbers = #tpu.dot_dimension_numbers<[1], [0], [0], [1], [0, 0, 1, 1], [], []>} : vector<16x32xf32>, vector<32x128xf32>, vector<16x128xf32> -> vector<16x128xf32>
      %81 = arith.addf %80, %30 : vector<16x128xf32>
      %82 = vector.extract_strided_slice %81 {offsets = [0, 0], sizes = [8, 128], strides = [1, 1]} : vector<16x128xf32> to vector<8x128xf32>
      %83 = arith.negf %82 : vector<8x128xf32>
      %84 = math.exp %83 : vector<8x128xf32>
      %cst_54 = arith.constant 1.000000e+00 : f32
      %85 = vector.broadcast %cst_54 : f32 to vector<8x128xf32>
      %86 = arith.addf %85, %84 : vector<8x128xf32>
      %87 = arith.divf %85, %86 : vector<8x128xf32>
      %88 = math.tanh %82 : vector<8x128xf32>
      %89 = vector.extract_strided_slice %87 {offsets = [0, 0], sizes = [8, 32], strides = [1, 1]} : vector<8x128xf32> to vector<8x32xf32>
      %90 = vector.extract_strided_slice %88 {offsets = [0, 64], sizes = [8, 32], strides = [1, 1]} : vector<8x128xf32> to vector<8x32xf32>
      %91 = arith.mulf %89, %90 : vector<8x32xf32>
      %92 = vector.extract_strided_slice %87 {offsets = [0, 96], sizes = [8, 32], strides = [1, 1]} : vector<8x128xf32> to vector<8x32xf32>
      %93 = math.tanh %91 : vector<8x32xf32>
      %94 = arith.mulf %92, %93 : vector<8x32xf32>
      %95 = vector.extract_strided_slice %81 {offsets = [8, 0], sizes = [8, 128], strides = [1, 1]} : vector<16x128xf32> to vector<8x128xf32>
      %cst_55 = arith.constant dense<0.000000e+00> : vector<8x128xf32>
      %96 = tpu.matmul %94, %23, %cst_55 {dimension_numbers = #tpu.dot_dimension_numbers<[1], [0], [0], [1], [0, 0, 1, 1], [], []>} : vector<8x32xf32>, vector<32x128xf32>, vector<8x128xf32> -> vector<8x128xf32>
      %97 = arith.addf %95, %96 : vector<8x128xf32>
      %98 = arith.negf %97 : vector<8x128xf32>
      %99 = math.exp %98 : vector<8x128xf32>
      %cst_56 = arith.constant 1.000000e+00 : f32
      %100 = vector.broadcast %cst_56 : f32 to vector<8x128xf32>
      %101 = arith.addf %100, %99 : vector<8x128xf32>
      %102 = arith.divf %100, %101 : vector<8x128xf32>
      %103 = math.tanh %97 : vector<8x128xf32>
      %104 = vector.extract_strided_slice %102 {offsets = [0, 32], sizes = [8, 32], strides = [1, 1]} : vector<8x128xf32> to vector<8x32xf32>
      %105 = arith.mulf %104, %91 : vector<8x32xf32>
      %106 = vector.extract_strided_slice %102 {offsets = [0, 0], sizes = [8, 32], strides = [1, 1]} : vector<8x128xf32> to vector<8x32xf32>
      %107 = vector.extract_strided_slice %103 {offsets = [0, 64], sizes = [8, 32], strides = [1, 1]} : vector<8x128xf32> to vector<8x32xf32>
      %108 = arith.mulf %106, %107 : vector<8x32xf32>
      %109 = arith.addf %105, %108 : vector<8x32xf32>
      %110 = vector.extract_strided_slice %102 {offsets = [0, 96], sizes = [8, 32], strides = [1, 1]} : vector<8x128xf32> to vector<8x32xf32>
      %111 = math.tanh %109 : vector<8x32xf32>
      %112 = arith.mulf %110, %111 : vector<8x32xf32>
      %cst_57 = arith.constant dense<0.000000e+00> : vector<8x32xf32>
      %113 = tpu.matmul %112, %25, %cst_57 {dimension_numbers = #tpu.dot_dimension_numbers<[1], [0], [0], [1], [0, 0, 1, 1], [], []>} : vector<8x32xf32>, vector<32x32xf32>, vector<8x32xf32> -> vector<8x32xf32>
      %114 = arith.addf %113, %39 : vector<8x32xf32>
      %cst_58 = arith.constant dense<0.000000e+00> : vector<16x32xf32>
      %115 = tpu.matmul %77, %24, %cst_58 {dimension_numbers = #tpu.dot_dimension_numbers<[1], [0], [0], [1], [0, 0, 1, 1], [], []>} : vector<16x32xf32>, vector<32x32xf32>, vector<16x32xf32> -> vector<16x32xf32>
      %116 = arith.addf %115, %33 : vector<16x32xf32>
      %117 = vector.extract_strided_slice %116 {offsets = [0, 0], sizes = [8, 32], strides = [1, 1]} : vector<16x32xf32> to vector<8x32xf32>
      %118 = arith.addf %117, %114 : vector<8x32xf32>
      %119 = math.tanh %118 : vector<8x32xf32>
      %120 = vector.extract_strided_slice %116 {offsets = [8, 0], sizes = [8, 32], strides = [1, 1]} : vector<16x32xf32> to vector<8x32xf32>
      %121 = arith.addf %120, %114 : vector<8x32xf32>
      %122 = math.tanh %121 : vector<8x32xf32>
      %123 = arith.mulf %45, %119 : vector<8x32xf32>
      %cst_59 = arith.constant dense<0.000000e+00> : vector<8xf32>
      %124 = vector.multi_reduction <add>, %123, %cst_59 [1] : vector<8x32xf32> to vector<8xf32>
      %125 = vector.shape_cast %124 : vector<8xf32> to vector<8x1xf32>
      %126 = arith.mulf %45, %122 : vector<8x32xf32>
      %cst_60 = arith.constant dense<0.000000e+00> : vector<8xf32>
      %127 = vector.multi_reduction <add>, %126, %cst_60 [1] : vector<8x32xf32> to vector<8xf32>
      %128 = vector.shape_cast %127 : vector<8xf32> to vector<8x1xf32>
      %129 = arith.addf %125, %128 : vector<8x1xf32>
      %130 = arith.divf %125, %129 : vector<8x1xf32>
      %131 = vector.broadcast %130 : vector<8x1xf32> to vector<8x32xf32>
      %132 = arith.mulf %131, %78 : vector<8x32xf32>
      %133 = arith.divf %128, %129 : vector<8x1xf32>
      %134 = vector.broadcast %133 : vector<8x1xf32> to vector<8x32xf32>
      %135 = arith.mulf %134, %79 : vector<8x32xf32>
      %136 = tpu.concatenate %132, %135 in 0 : vector<8x32xf32>, vector<8x32xf32> -> vector<16x32xf32>
      %cst_61 = arith.constant dense<0.000000e+00> : vector<16x32xf32>
      %137 = tpu.matmul %136, %26, %cst_61 {dimension_numbers = #tpu.dot_dimension_numbers<[1], [0], [0], [1], [0, 0, 1, 1], [], []>} : vector<16x32xf32>, vector<32x32xf32>, vector<16x32xf32> -> vector<16x32xf32>
      %138 = arith.addf %137, %36 : vector<16x32xf32>
      %139 = math.tanh %138 : vector<16x32xf32>
      %140 = vector.extract_strided_slice %139 {offsets = [0, 0], sizes = [8, 32], strides = [1, 1]} : vector<16x32xf32> to vector<8x32xf32>
      %141 = vector.extract_strided_slice %139 {offsets = [8, 0], sizes = [8, 32], strides = [1, 1]} : vector<16x32xf32> to vector<8x32xf32>
      %142 = tpu.concatenate %140, %141 in 1 : vector<8x32xf32>, vector<8x32xf32> -> vector<8x64xf32>
      %cst_62 = arith.constant dense<0.000000e+00> : vector<8x128xf32>
      %143 = tpu.matmul %142, %27, %cst_62 {dimension_numbers = #tpu.dot_dimension_numbers<[1], [0], [0], [1], [0, 0, 1, 1], [], []>} : vector<8x64xf32>, vector<64x128xf32>, vector<8x128xf32> -> vector<8x128xf32>
      %144 = arith.addf %143, %42 : vector<8x128xf32>
      %145 = arith.negf %144 : vector<8x128xf32>
      %146 = math.exp %145 : vector<8x128xf32>
      %cst_63 = arith.constant 1.000000e+00 : f32
      %147 = vector.broadcast %cst_63 : f32 to vector<8x128xf32>
      %148 = arith.addf %147, %146 : vector<8x128xf32>
      %149 = arith.divf %147, %148 : vector<8x128xf32>
      %150 = math.tanh %144 : vector<8x128xf32>
      %151 = vector.extract_strided_slice %149 {offsets = [0, 0], sizes = [8, 32], strides = [1, 1]} : vector<8x128xf32> to vector<8x32xf32>
      %152 = vector.extract_strided_slice %150 {offsets = [0, 96], sizes = [8, 32], strides = [1, 1]} : vector<8x128xf32> to vector<8x32xf32>
      %153 = arith.mulf %151, %152 : vector<8x32xf32>
      %154 = vector.extract_strided_slice %149 {offsets = [0, 32], sizes = [8, 32], strides = [1, 1]} : vector<8x128xf32> to vector<8x32xf32>
      %155 = arith.mulf %154, %75 : vector<8x32xf32>
      %156 = arith.addf %153, %155 : vector<8x32xf32>
      %157 = vector.extract_strided_slice %149 {offsets = [0, 64], sizes = [8, 32], strides = [1, 1]} : vector<8x128xf32> to vector<8x32xf32>
      %158 = arith.mulf %157, %76 : vector<8x32xf32>
      %159 = arith.addf %156, %158 : vector<8x32xf32>
      %160 = math.tanh %159 : vector<8x32xf32>
      %161 = tpu.concatenate %159, %160 in 1 : vector<8x32xf32>, vector<8x32xf32> -> vector<8x64xf32>
      %162 = vector.extract_strided_slice %68 {offsets = [0, 0], sizes = [8, 1], strides = [1, 1]} : vector<16x1xi32> to vector<8x1xi32>
      %c0_i32_64 = arith.constant 0 : i32
      %163 = vector.broadcast %c0_i32_64 : i32 to vector<8x1xi32>
      %164 = arith.cmpi sge, %162, %163 : vector<8x1xi32>
      %cst_65 = arith.constant 0.000000e+00 : f32
      %165 = vector.shape_cast %164 : vector<8x1xi1> to vector<8x1xi1>
      %166 = vector.broadcast %165 : vector<8x1xi1> to vector<8x64xi1>
      %167 = vector.broadcast %cst_65 : f32 to vector<8x64xf32>
      %168 = arith.select %166, %161, %167 : vector<8x64xi1>, vector<8x64xf32>
      %c8_66 = arith.constant 8 : index
      %c0_67 = arith.constant 0 : index
      %169 = vector.load %arg20[%c8_66, %c0_67] : memref<24x64xf32, #tpu.memory_space<vmem>>, vector<8x64xf32>
      tpu.vector_store %arg20[%c8_66, %c0_67], %168 {strides = array<i32>} : memref<24x64xf32, #tpu.memory_space<vmem>>, vector<8x64xf32>,
    } else {
    }
    %c1_i32 = arith.constant 1 : i32
    %52 = arith.cmpi sgt, %1, %c1_i32 : i32
    %53 = arith.extui %52 : i1 to i32
    %c0_i32_40 = arith.constant 0 : i32
    %54 = arith.cmpi ne, %53, %c0_i32_40 : i32
    scf.if %54 {
      %67 = vector.extract_strided_slice %47 {offsets = [1, 0, 0], sizes = [1, 16, 1], strides = [1, 1, 1]} : vector<2x16x1xi32> to vector<1x16x1xi32>
      %68 = vector.shape_cast %67 : vector<1x16x1xi32> to vector<16x1xi32>
      %69 = vector.broadcast %68 : vector<16x1xi32> to vector<16x24xi32>
      %70 = arith.cmpi eq, %48, %69 : vector<16x24xi32>
      %71 = arith.extui %70 : vector<16x24xi1> to vector<16x24xi32>
      %72 = arith.sitofp %71 : vector<16x24xi32> to vector<16x24xf32>
      %c0_50 = arith.constant 0 : index
      %c0_51 = arith.constant 0 : index
      %73 = vector.load %arg20[%c0_50, %c0_51] : memref<24x64xf32, #tpu.memory_space<vmem>>, vector<24x64xf32>
      %cst_52 = arith.constant dense<0.000000e+00> : vector<16x64xf32>
      %74 = tpu.matmul %72, %73, %cst_52 {dimension_numbers = #tpu.dot_dimension_numbers<[1], [0], [0], [1], [0, 0, 1, 1], [], []>} : vector<16x24xf32>, vector<24x64xf32>, vector<16x64xf32> -> vector<16x64xf32>
      %75 = vector.extract_strided_slice %74 {offsets = [0, 0], sizes = [8, 32], strides = [1, 1]} : vector<16x64xf32> to vector<8x32xf32>
      %76 = vector.extract_strided_slice %74 {offsets = [8, 0], sizes = [8, 32], strides = [1, 1]} : vector<16x64xf32> to vector<8x32xf32>
      %77 = vector.extract_strided_slice %74 {offsets = [0, 32], sizes = [16, 32], strides = [1, 1]} : vector<16x64xf32> to vector<16x32xf32>
      %78 = vector.extract_strided_slice %77 {offsets = [0, 0], sizes = [8, 32], strides = [1, 1]} : vector<16x32xf32> to vector<8x32xf32>
      %79 = vector.extract_strided_slice %77 {offsets = [8, 0], sizes = [8, 32], strides = [1, 1]} : vector<16x32xf32> to vector<8x32xf32>
      %cst_53 = arith.constant dense<0.000000e+00> : vector<16x128xf32>
      %80 = tpu.matmul %77, %22, %cst_53 {dimension_numbers = #tpu.dot_dimension_numbers<[1], [0], [0], [1], [0, 0, 1, 1], [], []>} : vector<16x32xf32>, vector<32x128xf32>, vector<16x128xf32> -> vector<16x128xf32>
      %81 = arith.addf %80, %30 : vector<16x128xf32>
      %82 = vector.extract_strided_slice %81 {offsets = [0, 0], sizes = [8, 128], strides = [1, 1]} : vector<16x128xf32> to vector<8x128xf32>
      %83 = arith.negf %82 : vector<8x128xf32>
      %84 = math.exp %83 : vector<8x128xf32>
      %cst_54 = arith.constant 1.000000e+00 : f32
      %85 = vector.broadcast %cst_54 : f32 to vector<8x128xf32>
      %86 = arith.addf %85, %84 : vector<8x128xf32>
      %87 = arith.divf %85, %86 : vector<8x128xf32>
      %88 = math.tanh %82 : vector<8x128xf32>
      %89 = vector.extract_strided_slice %87 {offsets = [0, 0], sizes = [8, 32], strides = [1, 1]} : vector<8x128xf32> to vector<8x32xf32>
      %90 = vector.extract_strided_slice %88 {offsets = [0, 64], sizes = [8, 32], strides = [1, 1]} : vector<8x128xf32> to vector<8x32xf32>
      %91 = arith.mulf %89, %90 : vector<8x32xf32>
      %92 = vector.extract_strided_slice %87 {offsets = [0, 96], sizes = [8, 32], strides = [1, 1]} : vector<8x128xf32> to vector<8x32xf32>
      %93 = math.tanh %91 : vector<8x32xf32>
      %94 = arith.mulf %92, %93 : vector<8x32xf32>
      %95 = vector.extract_strided_slice %81 {offsets = [8, 0], sizes = [8, 128], strides = [1, 1]} : vector<16x128xf32> to vector<8x128xf32>
      %cst_55 = arith.constant dense<0.000000e+00> : vector<8x128xf32>
      %96 = tpu.matmul %94, %23, %cst_55 {dimension_numbers = #tpu.dot_dimension_numbers<[1], [0], [0], [1], [0, 0, 1, 1], [], []>} : vector<8x32xf32>, vector<32x128xf32>, vector<8x128xf32> -> vector<8x128xf32>
      %97 = arith.addf %95, %96 : vector<8x128xf32>
      %98 = arith.negf %97 : vector<8x128xf32>
      %99 = math.exp %98 : vector<8x128xf32>
      %cst_56 = arith.constant 1.000000e+00 : f32
      %100 = vector.broadcast %cst_56 : f32 to vector<8x128xf32>
      %101 = arith.addf %100, %99 : vector<8x128xf32>
      %102 = arith.divf %100, %101 : vector<8x128xf32>
      %103 = math.tanh %97 : vector<8x128xf32>
      %104 = vector.extract_strided_slice %102 {offsets = [0, 32], sizes = [8, 32], strides = [1, 1]} : vector<8x128xf32> to vector<8x32xf32>
      %105 = arith.mulf %104, %91 : vector<8x32xf32>
      %106 = vector.extract_strided_slice %102 {offsets = [0, 0], sizes = [8, 32], strides = [1, 1]} : vector<8x128xf32> to vector<8x32xf32>
      %107 = vector.extract_strided_slice %103 {offsets = [0, 64], sizes = [8, 32], strides = [1, 1]} : vector<8x128xf32> to vector<8x32xf32>
      %108 = arith.mulf %106, %107 : vector<8x32xf32>
      %109 = arith.addf %105, %108 : vector<8x32xf32>
      %110 = vector.extract_strided_slice %102 {offsets = [0, 96], sizes = [8, 32], strides = [1, 1]} : vector<8x128xf32> to vector<8x32xf32>
      %111 = math.tanh %109 : vector<8x32xf32>
      %112 = arith.mulf %110, %111 : vector<8x32xf32>
      %cst_57 = arith.constant dense<0.000000e+00> : vector<8x32xf32>
      %113 = tpu.matmul %112, %25, %cst_57 {dimension_numbers = #tpu.dot_dimension_numbers<[1], [0], [0], [1], [0, 0, 1, 1], [], []>} : vector<8x32xf32>, vector<32x32xf32>, vector<8x32xf32> -> vector<8x32xf32>
      %114 = arith.addf %113, %39 : vector<8x32xf32>
      %cst_58 = arith.constant dense<0.000000e+00> : vector<16x32xf32>
      %115 = tpu.matmul %77, %24, %cst_58 {dimension_numbers = #tpu.dot_dimension_numbers<[1], [0], [0], [1], [0, 0, 1, 1], [], []>} : vector<16x32xf32>, vector<32x32xf32>, vector<16x32xf32> -> vector<16x32xf32>
      %116 = arith.addf %115, %33 : vector<16x32xf32>
      %117 = vector.extract_strided_slice %116 {offsets = [0, 0], sizes = [8, 32], strides = [1, 1]} : vector<16x32xf32> to vector<8x32xf32>
      %118 = arith.addf %117, %114 : vector<8x32xf32>
      %119 = math.tanh %118 : vector<8x32xf32>
      %120 = vector.extract_strided_slice %116 {offsets = [8, 0], sizes = [8, 32], strides = [1, 1]} : vector<16x32xf32> to vector<8x32xf32>
      %121 = arith.addf %120, %114 : vector<8x32xf32>
      %122 = math.tanh %121 : vector<8x32xf32>
      %123 = arith.mulf %45, %119 : vector<8x32xf32>
      %cst_59 = arith.constant dense<0.000000e+00> : vector<8xf32>
      %124 = vector.multi_reduction <add>, %123, %cst_59 [1] : vector<8x32xf32> to vector<8xf32>
      %125 = vector.shape_cast %124 : vector<8xf32> to vector<8x1xf32>
      %126 = arith.mulf %45, %122 : vector<8x32xf32>
      %cst_60 = arith.constant dense<0.000000e+00> : vector<8xf32>
      %127 = vector.multi_reduction <add>, %126, %cst_60 [1] : vector<8x32xf32> to vector<8xf32>
      %128 = vector.shape_cast %127 : vector<8xf32> to vector<8x1xf32>
      %129 = arith.addf %125, %128 : vector<8x1xf32>
      %130 = arith.divf %125, %129 : vector<8x1xf32>
      %131 = vector.broadcast %130 : vector<8x1xf32> to vector<8x32xf32>
      %132 = arith.mulf %131, %78 : vector<8x32xf32>
      %133 = arith.divf %128, %129 : vector<8x1xf32>
      %134 = vector.broadcast %133 : vector<8x1xf32> to vector<8x32xf32>
      %135 = arith.mulf %134, %79 : vector<8x32xf32>
      %136 = tpu.concatenate %132, %135 in 0 : vector<8x32xf32>, vector<8x32xf32> -> vector<16x32xf32>
      %cst_61 = arith.constant dense<0.000000e+00> : vector<16x32xf32>
      %137 = tpu.matmul %136, %26, %cst_61 {dimension_numbers = #tpu.dot_dimension_numbers<[1], [0], [0], [1], [0, 0, 1, 1], [], []>} : vector<16x32xf32>, vector<32x32xf32>, vector<16x32xf32> -> vector<16x32xf32>
      %138 = arith.addf %137, %36 : vector<16x32xf32>
      %139 = math.tanh %138 : vector<16x32xf32>
      %140 = vector.extract_strided_slice %139 {offsets = [0, 0], sizes = [8, 32], strides = [1, 1]} : vector<16x32xf32> to vector<8x32xf32>
      %141 = vector.extract_strided_slice %139 {offsets = [8, 0], sizes = [8, 32], strides = [1, 1]} : vector<16x32xf32> to vector<8x32xf32>
      %142 = tpu.concatenate %140, %141 in 1 : vector<8x32xf32>, vector<8x32xf32> -> vector<8x64xf32>
      %cst_62 = arith.constant dense<0.000000e+00> : vector<8x128xf32>
      %143 = tpu.matmul %142, %27, %cst_62 {dimension_numbers = #tpu.dot_dimension_numbers<[1], [0], [0], [1], [0, 0, 1, 1], [], []>} : vector<8x64xf32>, vector<64x128xf32>, vector<8x128xf32> -> vector<8x128xf32>
      %144 = arith.addf %143, %42 : vector<8x128xf32>
      %145 = arith.negf %144 : vector<8x128xf32>
      %146 = math.exp %145 : vector<8x128xf32>
      %cst_63 = arith.constant 1.000000e+00 : f32
      %147 = vector.broadcast %cst_63 : f32 to vector<8x128xf32>
      %148 = arith.addf %147, %146 : vector<8x128xf32>
      %149 = arith.divf %147, %148 : vector<8x128xf32>
      %150 = math.tanh %144 : vector<8x128xf32>
      %151 = vector.extract_strided_slice %149 {offsets = [0, 0], sizes = [8, 32], strides = [1, 1]} : vector<8x128xf32> to vector<8x32xf32>
      %152 = vector.extract_strided_slice %150 {offsets = [0, 96], sizes = [8, 32], strides = [1, 1]} : vector<8x128xf32> to vector<8x32xf32>
      %153 = arith.mulf %151, %152 : vector<8x32xf32>
      %154 = vector.extract_strided_slice %149 {offsets = [0, 32], sizes = [8, 32], strides = [1, 1]} : vector<8x128xf32> to vector<8x32xf32>
      %155 = arith.mulf %154, %75 : vector<8x32xf32>
      %156 = arith.addf %153, %155 : vector<8x32xf32>
      %157 = vector.extract_strided_slice %149 {offsets = [0, 64], sizes = [8, 32], strides = [1, 1]} : vector<8x128xf32> to vector<8x32xf32>
      %158 = arith.mulf %157, %76 : vector<8x32xf32>
      %159 = arith.addf %156, %158 : vector<8x32xf32>
      %160 = math.tanh %159 : vector<8x32xf32>
      %161 = tpu.concatenate %159, %160 in 1 : vector<8x32xf32>, vector<8x32xf32> -> vector<8x64xf32>
      %162 = vector.extract_strided_slice %68 {offsets = [0, 0], sizes = [8, 1], strides = [1, 1]} : vector<16x1xi32> to vector<8x1xi32>
      %c0_i32_64 = arith.constant 0 : i32
      %163 = vector.broadcast %c0_i32_64 : i32 to vector<8x1xi32>
      %164 = arith.cmpi sge, %162, %163 : vector<8x1xi32>
      %cst_65 = arith.constant 0.000000e+00 : f32
      %165 = vector.shape_cast %164 : vector<8x1xi1> to vector<8x1xi1>
      %166 = vector.broadcast %165 : vector<8x1xi1> to vector<8x64xi1>
      %167 = vector.broadcast %cst_65 : f32 to vector<8x64xf32>
      %168 = arith.select %166, %161, %167 : vector<8x64xi1>, vector<8x64xf32>
      %c16 = arith.constant 16 : index
      %c0_66 = arith.constant 0 : index
      %169 = vector.load %arg20[%c16, %c0_66] : memref<24x64xf32, #tpu.memory_space<vmem>>, vector<8x64xf32>
      tpu.vector_store %arg20[%c16, %c0_66], %168 {strides = array<i32>} : memref<24x64xf32, #tpu.memory_space<vmem>>, vector<8x64xf32>,
    } else {
    }
    %55 = tpu.iota {dimensions = array<i32: 1>} : vector<2x24xi32>
    %c0_41 = arith.constant 0 : index
    %c0_42 = arith.constant 0 : index
    %c0_43 = arith.constant 0 : index
    %56 = vector.load %arg3[%c0_41, %c0_42, %c0_43] : memref<1x2x1xi32, #tpu.memory_space<vmem>>, vector<1x2x1xi32>
    %57 = vector.shape_cast %56 : vector<1x2x1xi32> to vector<2x1xi32>
    %58 = vector.broadcast %57 : vector<2x1xi32> to vector<2x24xi32>
    %59 = arith.cmpi eq, %55, %58 : vector<2x24xi32>
    %60 = arith.extui %59 : vector<2x24xi1> to vector<2x24xi32>
    %61 = arith.sitofp %60 : vector<2x24xi32> to vector<2x24xf32>
    %c0_44 = arith.constant 0 : index
    %c0_45 = arith.constant 0 : index
    %62 = vector.load %arg20[%c0_44, %c0_45] : memref<24x64xf32, #tpu.memory_space<vmem>>, vector<24x64xf32>
    %cst_46 = arith.constant dense<0.000000e+00> : vector<2x64xf32>
    %63 = tpu.matmul %61, %62, %cst_46 {dimension_numbers = #tpu.dot_dimension_numbers<[1], [0], [0], [1], [0, 0, 1, 1], [], []>} : vector<2x24xf32>, vector<24x64xf32>, vector<2x64xf32> -> vector<2x64xf32>
    %c0_47 = arith.constant 0 : index
    %c0_48 = arith.constant 0 : index
    %c0_49 = arith.constant 0 : index
    %64 = vector.load %arg19[%c0_47, %c0_48, %c0_49] : memref<1x2x64xf32, #tpu.memory_space<vmem>>, vector<1x2x64xf32>
    %65 = vector.shape_cast %64 : vector<1x2x64xf32> to vector<2x64xf32>
    %66 = vector.shape_cast %63 : vector<2x64xf32> to vector<1x2x64xf32>
    tpu.vector_store %arg19[%c0_47, %c0_48, %c0_49], %66 {strides = array<i32>} : memref<1x2x64xf32, #tpu.memory_space<vmem>>, vector<1x2x64xf32>,
    return
  }
  func.func @transform_0(%arg0: i32, %arg1: memref<2xi32, #tpu.memory_space<smem>>) -> (i32, i32, i32, i32) {
    %c0_i32 = arith.constant 0 : i32
    %c0_i32_0 = arith.constant 0 : i32
    %c0_i32_1 = arith.constant 0 : i32
    %c0_i32_2 = arith.constant 0 : i32
    return %arg0, %c0_i32, %c0_i32_0, %c0_i32_1 : i32, i32, i32, i32
  }
  func.func @transform_1(%arg0: i32, %arg1: memref<2xi32, #tpu.memory_space<smem>>) -> (i32, i32, i32) {
    %c0_i32 = arith.constant 0 : i32
    %c0_i32_0 = arith.constant 0 : i32
    %c0_i32_1 = arith.constant 0 : i32
    return %arg0, %c0_i32, %c0_i32_0 : i32, i32, i32
  }
  func.func @transform_2(%arg0: i32, %arg1: memref<2xi32, #tpu.memory_space<smem>>) -> (i32, i32, i32) {
    %c0_i32 = arith.constant 0 : i32
    %c0_i32_0 = arith.constant 0 : i32
    %c0_i32_1 = arith.constant 0 : i32
    return %arg0, %c0_i32, %c0_i32_0 : i32, i32, i32
  }
  func.func @transform_3(%arg0: i32, %arg1: memref<2xi32, #tpu.memory_space<smem>>) -> (i32, i32) {
    %c0_i32 = arith.constant 0 : i32
    %c0_i32_0 = arith.constant 0 : i32
    %c0_i32_1 = arith.constant 0 : i32
    return %c0_i32, %c0_i32_0 : i32, i32
  }
  func.func @transform_4(%arg0: i32, %arg1: memref<2xi32, #tpu.memory_space<smem>>) -> (i32, i32) {
    %c0_i32 = arith.constant 0 : i32
    %c0_i32_0 = arith.constant 0 : i32
    %c0_i32_1 = arith.constant 0 : i32
    return %c0_i32, %c0_i32_0 : i32, i32
  }
  func.func @transform_5(%arg0: i32, %arg1: memref<2xi32, #tpu.memory_space<smem>>) -> (i32, i32) {
    %c0_i32 = arith.constant 0 : i32
    %c0_i32_0 = arith.constant 0 : i32
    %c0_i32_1 = arith.constant 0 : i32
    return %c0_i32, %c0_i32_0 : i32, i32
  }
  func.func @transform_6(%arg0: i32, %arg1: memref<2xi32, #tpu.memory_space<smem>>) -> (i32, i32) {
    %c0_i32 = arith.constant 0 : i32
    %c0_i32_0 = arith.constant 0 : i32
    %c0_i32_1 = arith.constant 0 : i32
    return %c0_i32, %c0_i32_0 : i32, i32
  }
  func.func @transform_7(%arg0: i32, %arg1: memref<2xi32, #tpu.memory_space<smem>>) -> (i32, i32) {
    %c0_i32 = arith.constant 0 : i32
    %c0_i32_0 = arith.constant 0 : i32
    %c0_i32_1 = arith.constant 0 : i32
    return %c0_i32, %c0_i32_0 : i32, i32
  }
  func.func @transform_8(%arg0: i32, %arg1: memref<2xi32, #tpu.memory_space<smem>>) -> (i32, i32) {
    %c0_i32 = arith.constant 0 : i32
    %c0_i32_0 = arith.constant 0 : i32
    %c0_i32_1 = arith.constant 0 : i32
    return %c0_i32, %c0_i32_0 : i32, i32
  }
  func.func @transform_9(%arg0: i32, %arg1: memref<2xi32, #tpu.memory_space<smem>>) -> (i32, i32) {
    %c0_i32 = arith.constant 0 : i32
    %c0_i32_0 = arith.constant 0 : i32
    %c0_i32_1 = arith.constant 0 : i32
    return %c0_i32, %c0_i32_0 : i32, i32
  }
  func.func @transform_10(%arg0: i32, %arg1: memref<2xi32, #tpu.memory_space<smem>>) -> (i32, i32) {
    %c0_i32 = arith.constant 0 : i32
    %c0_i32_0 = arith.constant 0 : i32
    %c0_i32_1 = arith.constant 0 : i32
    return %c0_i32, %c0_i32_0 : i32, i32
  }
  func.func @transform_11(%arg0: i32, %arg1: memref<2xi32, #tpu.memory_space<smem>>) -> (i32, i32) {
    %c0_i32 = arith.constant 0 : i32
    %c0_i32_0 = arith.constant 0 : i32
    %c0_i32_1 = arith.constant 0 : i32
    return %c0_i32, %c0_i32_0 : i32, i32
  }
  func.func @transform_12(%arg0: i32, %arg1: memref<2xi32, #tpu.memory_space<smem>>) -> (i32, i32) {
    %c0_i32 = arith.constant 0 : i32
    %c0_i32_0 = arith.constant 0 : i32
    %c0_i32_1 = arith.constant 0 : i32
    return %c0_i32, %c0_i32_0 : i32, i32
  }
  func.func @transform_13(%arg0: i32, %arg1: memref<2xi32, #tpu.memory_space<smem>>) -> (i32, i32) {
    %c0_i32 = arith.constant 0 : i32
    %c0_i32_0 = arith.constant 0 : i32
    %c0_i32_1 = arith.constant 0 : i32
    return %c0_i32, %c0_i32_0 : i32, i32
  }
  func.func @transform_14(%arg0: i32, %arg1: memref<2xi32, #tpu.memory_space<smem>>) -> (i32, i32) {
    %c0_i32 = arith.constant 0 : i32
    %c0_i32_0 = arith.constant 0 : i32
    %c0_i32_1 = arith.constant 0 : i32
    return %c0_i32, %c0_i32_0 : i32, i32
  }
  func.func @transform_15(%arg0: i32, %arg1: memref<2xi32, #tpu.memory_space<smem>>) -> (i32, i32) {
    %c0_i32 = arith.constant 0 : i32
    %c0_i32_0 = arith.constant 0 : i32
    %c0_i32_1 = arith.constant 0 : i32
    return %c0_i32, %c0_i32_0 : i32, i32
  }
  func.func @transform_16(%arg0: i32, %arg1: memref<2xi32, #tpu.memory_space<smem>>) -> (i32, i32) {
    %c0_i32 = arith.constant 0 : i32
    %c0_i32_0 = arith.constant 0 : i32
    %c0_i32_1 = arith.constant 0 : i32
    return %c0_i32, %c0_i32_0 : i32, i32
  }
  func.func @transform_17(%arg0: i32, %arg1: memref<2xi32, #tpu.memory_space<smem>>) -> (i32, i32, i32) {
    %c0_i32 = arith.constant 0 : i32
    %c0_i32_0 = arith.constant 0 : i32
    %c0_i32_1 = arith.constant 0 : i32
    return %arg0, %c0_i32, %c0_i32_0 : i32, i32, i32
  }
}

</mosaic_0001>

<llo_original>
// kernel: _forward_groups.1
$region0: #{_forward_groups.1}
  #allocation0 [shape = 'u32[]', space=smem, size = 0x4, offset = 0x4, fixed_abs, tag = 'smem constant byte address 0x4 - core index']
  #allocation1 [shape = 'u32[144,128]{1,0:T(1,128)}', space=vmem, size = 0x12000, scoped, tag = 'internal scratch']
  #allocation2 [shape = 'f32[24,64]{1,0:T(8,128)}', space=vmem, size = 0x3000, scoped, tag = 'scratch operand']
  #allocation3 [shape = 's32[1]{0}', space=sflag, size = 0x4, scoped, tag = 'scoped memory for _forward_groups.1']
  #allocation4 [shape = 'u8[512]{0}', space=smem, size = 0x200, scoped, tag = 'prefetched SMEM operand 0']
  %s0 = inlined_call_operand.vmem [shape: s32[2], index: 0, kind: input, shape index: {}]
  %s1 = inlined_call_operand.vmem [shape: s32[2,2,16,1], index: 1, kind: input, shape index: {}]
  %s2 = inlined_call_operand.vmem [shape: s32[2,2,1], index: 2, kind: input, shape index: {}]
  %s3 = inlined_call_operand.vmem [shape: f32[2,8,32], index: 3, kind: input, shape index: {}]
  %s4 = inlined_call_operand.vmem [shape: f32[32,64], index: 4, kind: input, shape index: {}]
  %s5 = inlined_call_operand.vmem [shape: f32[1,64], index: 5, kind: input, shape index: {}]
  %s6 = inlined_call_operand.vmem [shape: f32[32,128], index: 6, kind: input, shape index: {}]
  %s7 = inlined_call_operand.vmem [shape: f32[32,128], index: 7, kind: input, shape index: {}]
  %s8 = inlined_call_operand.vmem [shape: f32[1,128], index: 8, kind: input, shape index: {}]
  %s9 = inlined_call_operand.vmem [shape: f32[32,32], index: 9, kind: input, shape index: {}]
  %s10 = inlined_call_operand.vmem [shape: f32[1,32], index: 10, kind: input, shape index: {}]
  %s11 = inlined_call_operand.vmem [shape: f32[32,32], index: 11, kind: input, shape index: {}]
  %s12 = inlined_call_operand.vmem [shape: f32[1,32], index: 12, kind: input, shape index: {}]
  %s13 = inlined_call_operand.vmem [shape: f32[32,32], index: 13, kind: input, shape index: {}]
  %s14 = inlined_call_operand.vmem [shape: f32[1,32], index: 14, kind: input, shape index: {}]
  %s15 = inlined_call_operand.vmem [shape: f32[1,32], index: 15, kind: input, shape index: {}]
  %s16 = inlined_call_operand.vmem [shape: f32[64,128], index: 16, kind: input, shape index: {}]
  %s17 = inlined_call_operand.vmem [shape: f32[1,128], index: 17, kind: input, shape index: {}]
  %s18 = inlined_call_operand.vmem [shape: f32[2,2,64], index: 18, kind: output, shape index: {}]
  %s19 = sld [smem:[#allocation0]]
  $region109: #{_forward_groups.1} parent=0
    _
  %s21 = ssub.s32 1, %s19
  %s22 = scalar_select 0, %s21, %s19
  %s23 = sshll.u32 %s0, 4
  %s24 = int_to_ptr.vmem [resolvable:$true] %s23
  %26 = dma.vmem_to_smem %s24, 16, [#allocation4], [#allocation3]
  %27 = dma.done [#allocation3], 16
  %28 = sfence
  loop: start=0, step=1, limit=4
  $region2: #{_forward_groups.1} parent=0 // loop_pre_header
    _
  $region3: #{_forward_groups.1} parent=0 // loop_header
    %s30 = sphi 0, %s34
    %p31 = scmp.ge.s32.totalorder %s30, 4
    %s40 = sphi 0, %s42
    %s43 = sphi 0, %s40
    %s44 = sphi 0, %s43
    %s60 = sphi 0, %s44
    %s66 = sphi 0, %s68
    %s69 = sphi 0, %s66
    %s70 = sphi 0, %s69
    %s86 = sphi 0, %s70
    %s92 = sphi 0, %s94
    %s95 = sphi 0, %s92
    %s96 = sphi 0, %s95
    %s112 = sphi 0, %s96
    %s116 = sphi 0, %s116
    %s118 = sphi 0, %s116
    %s119 = sphi 0, %s118
    %s133 = sphi 0, %s119
    %s137 = sphi 0, %s137
    %s139 = sphi 0, %s137
    %s140 = sphi 0, %s139
    %s154 = sphi 0, %s140
    %s158 = sphi 0, %s158
    %s160 = sphi 0, %s158
    %s161 = sphi 0, %s160
    %s175 = sphi 0, %s161
    %s179 = sphi 0, %s179
    %s181 = sphi 0, %s179
    %s182 = sphi 0, %s181
    %s196 = sphi 0, %s182
    %s200 = sphi 0, %s200
    %s202 = sphi 0, %s200
    %s203 = sphi 0, %s202
    %s217 = sphi 0, %s203
    %s221 = sphi 0, %s221
    %s223 = sphi 0, %s221
    %s224 = sphi 0, %s223
    %s238 = sphi 0, %s224
    %s242 = sphi 0, %s242
    %s244 = sphi 0, %s242
    %s245 = sphi 0, %s244
    %s259 = sphi 0, %s245
    %s263 = sphi 0, %s263
    %s265 = sphi 0, %s263
    %s266 = sphi 0, %s265
    %s280 = sphi 0, %s266
    %s284 = sphi 0, %s284
    %s286 = sphi 0, %s284
    %s287 = sphi 0, %s286
    %s301 = sphi 0, %s287
    %s305 = sphi 0, %s305
    %s307 = sphi 0, %s305
    %s308 = sphi 0, %s307
    %s322 = sphi 0, %s308
    %s326 = sphi 0, %s326
    %s328 = sphi 0, %s326
    %s329 = sphi 0, %s328
    %s343 = sphi 0, %s329
    %s347 = sphi 0, %s347
    %s349 = sphi 0, %s347
    %s350 = sphi 0, %s349
    %s364 = sphi 0, %s350
    %s368 = sphi 0, %s368
    %s370 = sphi 0, %s368
    %s371 = sphi 0, %s370
    %s385 = sphi 0, %s371
    %s389 = sphi 0, %s389
    %s391 = sphi 0, %s389
    %s392 = sphi 0, %s391
    %s406 = sphi 0, %s392
    %s412 = sphi 0, %s414
    %s415 = sphi 0, %s412
    %s416 = sphi 0, %s415
    %s432 = sphi 0, %s416
  $region4: #{_forward_groups.1} parent=0 // loop_header_branch
    %33 = sbr.rel (%p31) target = $region8
  $region5: #{_forward_groups.1} parent=0 // loop_body
    %s35 = ssub.s32 %s30, 1
    %s36 = ssub.s32 %s30, 2
    %s37 = sadd.s32 %s30, 1
    %s38 = ssub.s32 %s30, %s37
    %p39 = scmp.eq.s32.totalorder %s38, 0
    %s41 = sadd.s32 %s40, 1
    %s42 = scalar_select %p39, %s40, %s41
    %p45 = pneg %p39
    %p46 = scmp.eq.s32.totalorder %s30, 1
    %p47 = por %p45, %p46
    %p48 = scmp.ne.s32.totalorder %s40, %s43
    %p49 = scmp.eq.s32.totalorder %s30, 0
    %p50 = por %p48, %p49
    %p51 = scmp.ne.s32.totalorder %s40, %s43
    %p52 = scmp.eq.s32.totalorder %s35, 1
    %p53 = por %p51, %p52
    %p54 = scmp.ne.s32.totalorder %s43, %s44
    %p55 = scmp.eq.s32.totalorder %s35, 0
    %p56 = por %p54, %p55
    %p57 = scmp.ne.s32.totalorder %s43, %s44
    %p58 = scmp.eq.s32.totalorder %s36, 1
    %p59 = por %p57, %p58
    %p61 = scmp.ne.s32.totalorder %s44, %s60
    %p62 = scmp.eq.s32.totalorder %s36, 0
    %p63 = por %p61, %p62
    %s64 = ssub.s32 %s30, %s37
    %p65 = scmp.eq.s32.totalorder %s64, 0
    %s67 = sadd.s32 %s66, 1
    %s68 = scalar_select %p65, %s66, %s67
    %p71 = pneg %p65
    %p72 = scmp.eq.s32.totalorder %s30, 1
    %p73 = por %p71, %p72
    %p74 = scmp.ne.s32.totalorder %s66, %s69
    %p75 = scmp.eq.s32.totalorder %s30, 0
    %p76 = por %p74, %p75
    %p77 = scmp.ne.s32.totalorder %s66, %s69
    %p78 = scmp.eq.s32.totalorder %s35, 1
    %p79 = por %p77, %p78
    %p80 = scmp.ne.s32.totalorder %s69, %s70
    %p81 = scmp.eq.s32.totalorder %s35, 0
    %p82 = por %p80, %p81
    %p83 = scmp.ne.s32.totalorder %s69, %s70
    %p84 = scmp.eq.s32.totalorder %s36, 1
    %p85 = por %p83, %p84
    %p87 = scmp.ne.s32.totalorder %s70, %s86
    %p88 = scmp.eq.s32.totalorder %s36, 0
    %p89 = por %p87, %p88
    %s90 = ssub.s32 %s30, %s37
    %p91 = scmp.eq.s32.totalorder %s90, 0
    %s93 = sadd.s32 %s92, 1
    %s94 = scalar_select %p91, %s92, %s93
    %p97 = pneg %p91
    %p98 = scmp.eq.s32.totalorder %s30, 1
    %p99 = por %p97, %p98
    %p100 = scmp.ne.s32.totalorder %s92, %s95
    %p101 = scmp.eq.s32.totalorder %s30, 0
    %p102 = por %p100, %p101
    %p103 = scmp.ne.s32.totalorder %s92, %s95
    %p104 = scmp.eq.s32.totalorder %s35, 1
    %p105 = por %p103, %p104
    %p106 = scmp.ne.s32.totalorder %s95, %s96
    %p107 = scmp.eq.s32.totalorder %s35, 0
    %p108 = por %p106, %p107
    %p109 = scmp.ne.s32.totalorder %s95, %s96
    %p110 = scmp.eq.s32.totalorder %s36, 1
    %p111 = por %p109, %p110
    %p113 = scmp.ne.s32.totalorder %s96, %s112
    %p114 = scmp.eq.s32.totalorder %s36, 0
    %p115 = por %p113, %p114
    %s117 = sadd.s32 %s116, 1
    %p120 = scmp.eq.s32.totalorder %s30, 1
    %p121 = scmp.ne.s32.totalorder %s116, %s118
    %p122 = scmp.eq.s32.totalorder %s30, 0
    %p123 = por %p121, %p122
    %p124 = scmp.ne.s32.totalorder %s116, %s118
    %p125 = scmp.eq.s32.totalorder %s35, 1
    %p126 = por %p124, %p125
    %p127 = scmp.ne.s32.totalorder %s118, %s119
    %p128 = scmp.eq.s32.totalorder %s35, 0
    %p129 = por %p127, %p128
    %p130 = scmp.ne.s32.totalorder %s118, %s119
    %p131 = scmp.eq.s32.totalorder %s36, 1
    %p132 = por %p130, %p131
    %p134 = scmp.ne.s32.totalorder %s119, %s133
    %p135 = scmp.eq.s32.totalorder %s36, 0
    %p136 = por %p134, %p135
    %s138 = sadd.s32 %s137, 1
    %p141 = scmp.eq.s32.totalorder %s30, 1
    %p142 = scmp.ne.s32.totalorder %s137, %s139
    %p143 = scmp.eq.s32.totalorder %s30, 0
    %p144 = por %p142, %p143
    %p145 = scmp.ne.s32.totalorder %s137, %s139
    %p146 = scmp.eq.s32.totalorder %s35, 1
    %p147 = por %p145, %p146
    %p148 = scmp.ne.s32.totalorder %s139, %s140
    %p149 = scmp.eq.s32.totalorder %s35, 0
    %p150 = por %p148, %p149
    %p151 = scmp.ne.s32.totalorder %s139, %s140
    %p152 = scmp.eq.s32.totalorder %s36, 1
    %p153 = por %p151, %p152
    %p155 = scmp.ne.s32.totalorder %s140, %s154
    %p156 = scmp.eq.s32.totalorder %s36, 0
    %p157 = por %p155, %p156
    %s159 = sadd.s32 %s158, 1
    %p162 = scmp.eq.s32.totalorder %s30, 1
    %p163 = scmp.ne.s32.totalorder %s158, %s160
    %p164 = scmp.eq.s32.totalorder %s30, 0
    %p165 = por %p163, %p164
    %p166 = scmp.ne.s32.totalorder %s158, %s160
    %p167 = scmp.eq.s32.totalorder %s35, 1
    %p168 = por %p166, %p167
    %p169 = scmp.ne.s32.totalorder %s160, %s161
    %p170 = scmp.eq.s32.totalorder %s35, 0
    %p171 = por %p169, %p170
    %p172 = scmp.ne.s32.totalorder %s160, %s161
    %p173 = scmp.eq.s32.totalorder %s36, 1
    %p174 = por %p172, %p173
    %p176 = scmp.ne.s32.totalorder %s161, %s175
    %p177 = scmp.eq.s32.totalorder %s36, 0
    %p178 = por %p176, %p177
    %s180 = sadd.s32 %s179, 1
    %p183 = scmp.eq.s32.totalorder %s30, 1
    %p184 = scmp.ne.s32.totalorder %s179, %s181
    %p185 = scmp.eq.s32.totalorder %s30, 0
    %p186 = por %p184, %p185
    %p187 = scmp.ne.s32.totalorder %s179, %s181
    %p188 = scmp.eq.s32.totalorder %s35, 1
    %p189 = por %p187, %p188
    %p190 = scmp.ne.s32.totalorder %s181, %s182
    %p191 = scmp.eq.s32.totalorder %s35, 0
    %p192 = por %p190, %p191
    %p193 = scmp.ne.s32.totalorder %s181, %s182
    %p194 = scmp.eq.s32.totalorder %s36, 1
    %p195 = por %p193, %p194
    %p197 = scmp.ne.s32.totalorder %s182, %s196
    %p198 = scmp.eq.s32.totalorder %s36, 0
    %p199 = por %p197, %p198
    %s201 = sadd.s32 %s200, 1
    %p204 = scmp.eq.s32.totalorder %s30, 1
    %p205 = scmp.ne.s32.totalorder %s200, %s202
    %p206 = scmp.eq.s32.totalorder %s30, 0
    %p207 = por %p205, %p206
    %p208 = scmp.ne.s32.totalorder %s200, %s202
    %p209 = scmp.eq.s32.totalorder %s35, 1
    %p210 = por %p208, %p209
    %p211 = scmp.ne.s32.totalorder %s202, %s203
    %p212 = scmp.eq.s32.totalorder %s35, 0
    %p213 = por %p211, %p212
    %p214 = scmp.ne.s32.totalorder %s202, %s203
    %p215 = scmp.eq.s32.totalorder %s36, 1
    %p216 = por %p214, %p215
    %p218 = scmp.ne.s32.totalorder %s203, %s217
    %p219 = scmp.eq.s32.totalorder %s36, 0
    %p220 = por %p218, %p219
    %s222 = sadd.s32 %s221, 1
    %p225 = scmp.eq.s32.totalorder %s30, 1
    %p226 = scmp.ne.s32.totalorder %s221, %s223
    %p227 = scmp.eq.s32.totalorder %s30, 0
    %p228 = por %p226, %p227
    %p229 = scmp.ne.s32.totalorder %s221, %s223
    %p230 = scmp.eq.s32.totalorder %s35, 1
    %p231 = por %p229, %p230
    %p232 = scmp.ne.s32.totalorder %s223, %s224
    %p233 = scmp.eq.s32.totalorder %s35, 0
    %p234 = por %p232, %p233
    %p235 = scmp.ne.s32.totalorder %s223, %s224
    %p236 = scmp.eq.s32.totalorder %s36, 1
    %p237 = por %p235, %p236
    %p239 = scmp.ne.s32.totalorder %s224, %s238
    %p240 = scmp.eq.s32.totalorder %s36, 0
    %p241 = por %p239, %p240
    %s243 = sadd.s32 %s242, 1
    %p246 = scmp.eq.s32.totalorder %s30, 1
    %p247 = scmp.ne.s32.totalorder %s242, %s244
    %p248 = scmp.eq.s32.totalorder %s30, 0
    %p249 = por %p247, %p248
    %p250 = scmp.ne.s32.totalorder %s242, %s244
    %p251 = scmp.eq.s32.totalorder %s35, 1
    %p252 = por %p250, %p251
    %p253 = scmp.ne.s32.totalorder %s244, %s245
    %p254 = scmp.eq.s32.totalorder %s35, 0
    %p255 = por %p253, %p254
    %p256 = scmp.ne.s32.totalorder %s244, %s245
    %p257 = scmp.eq.s32.totalorder %s36, 1
    %p258 = por %p256, %p257
    %p260 = scmp.ne.s32.totalorder %s245, %s259
    %p261 = scmp.eq.s32.totalorder %s36, 0
    %p262 = por %p260, %p261
    %s264 = sadd.s32 %s263, 1
    %p267 = scmp.eq.s32.totalorder %s30, 1
    %p268 = scmp.ne.s32.totalorder %s263, %s265
    %p269 = scmp.eq.s32.totalorder %s30, 0
    %p270 = por %p268, %p269
    %p271 = scmp.ne.s32.totalorder %s263, %s265
    %p272 = scmp.eq.s32.totalorder %s35, 1
    %p273 = por %p271, %p272
    %p274 = scmp.ne.s32.totalorder %s265, %s266
    %p275 = scmp.eq.s32.totalorder %s35, 0
    %p276 = por %p274, %p275
    %p277 = scmp.ne.s32.totalorder %s265, %s266
    %p278 = scmp.eq.s32.totalorder %s36, 1
    %p279 = por %p277, %p278
    %p281 = scmp.ne.s32.totalorder %s266, %s280
    %p282 = scmp.eq.s32.totalorder %s36, 0
    %p283 = por %p281, %p282
    %s285 = sadd.s32 %s284, 1
    %p288 = scmp.eq.s32.totalorder %s30, 1
    %p289 = scmp.ne.s32.totalorder %s284, %s286
    %p290 = scmp.eq.s32.totalorder %s30, 0
    %p291 = por %p289, %p290
    %p292 = scmp.ne.s32.totalorder %s284, %s286
    %p293 = scmp.eq.s32.totalorder %s35, 1
    %p294 = por %p292, %p293
    %p295 = scmp.ne.s32.totalorder %s286, %s287
    %p296 = scmp.eq.s32.totalorder %s35, 0
    %p297 = por %p295, %p296
    %p298 = scmp.ne.s32.totalorder %s286, %s287
    %p299 = scmp.eq.s32.totalorder %s36, 1
    %p300 = por %p298, %p299
    %p302 = scmp.ne.s32.totalorder %s287, %s301
    %p303 = scmp.eq.s32.totalorder %s36, 0
    %p304 = por %p302, %p303
    %s306 = sadd.s32 %s305, 1
    %p309 = scmp.eq.s32.totalorder %s30, 1
    %p310 = scmp.ne.s32.totalorder %s305, %s307
    %p311 = scmp.eq.s32.totalorder %s30, 0
    %p312 = por %p310, %p311
    %p313 = scmp.ne.s32.totalorder %s305, %s307
    %p314 = scmp.eq.s32.totalorder %s35, 1
    %p315 = por %p313, %p314
    %p316 = scmp.ne.s32.totalorder %s307, %s308
    %p317 = scmp.eq.s32.totalorder %s35, 0
    %p318 = por %p316, %p317
    %p319 = scmp.ne.s32.totalorder %s307, %s308
    %p320 = scmp.eq.s32.totalorder %s36, 1
    %p321 = por %p319, %p320
    %p323 = scmp.ne.s32.totalorder %s308, %s322
    %p324 = scmp.eq.s32.totalorder %s36, 0
    %p325 = por %p323, %p324
    %s327 = sadd.s32 %s326, 1
    %p330 = scmp.eq.s32.totalorder %s30, 1
    %p331 = scmp.ne.s32.totalorder %s326, %s328
    %p332 = scmp.eq.s32.totalorder %s30, 0
    %p333 = por %p331, %p332
    %p334 = scmp.ne.s32.totalorder %s326, %s328
    %p335 = scmp.eq.s32.totalorder %s35, 1
    %p336 = por %p334, %p335
    %p337 = scmp.ne.s32.totalorder %s328, %s329
    %p338 = scmp.eq.s32.totalorder %s35, 0
    %p339 = por %p337, %p338
    %p340 = scmp.ne.s32.totalorder %s328, %s329
    %p341 = scmp.eq.s32.totalorder %s36, 1
    %p342 = por %p340, %p341
    %p344 = scmp.ne.s32.totalorder %s329, %s343
    %p345 = scmp.eq.s32.totalorder %s36, 0
    %p346 = por %p344, %p345
    %s348 = sadd.s32 %s347, 1
    %p351 = scmp.eq.s32.totalorder %s30, 1
    %p352 = scmp.ne.s32.totalorder %s347, %s349
    %p353 = scmp.eq.s32.totalorder %s30, 0
    %p354 = por %p352, %p353
    %p355 = scmp.ne.s32.totalorder %s347, %s349
    %p356 = scmp.eq.s32.totalorder %s35, 1
    %p357 = por %p355, %p356
    %p358 = scmp.ne.s32.totalorder %s349, %s350
    %p359 = scmp.eq.s32.totalorder %s35, 0
    %p360 = por %p358, %p359
    %p361 = scmp.ne.s32.totalorder %s349, %s350
    %p362 = scmp.eq.s32.totalorder %s36, 1
    %p363 = por %p361, %p362
    %p365 = scmp.ne.s32.totalorder %s350, %s364
    %p366 = scmp.eq.s32.totalorder %s36, 0
    %p367 = por %p365, %p366
    %s369 = sadd.s32 %s368, 1
    %p372 = scmp.eq.s32.totalorder %s30, 1
    %p373 = scmp.ne.s32.totalorder %s368, %s370
    %p374 = scmp.eq.s32.totalorder %s30, 0
    %p375 = por %p373, %p374
    %p376 = scmp.ne.s32.totalorder %s368, %s370
    %p377 = scmp.eq.s32.totalorder %s35, 1
    %p378 = por %p376, %p377
    %p379 = scmp.ne.s32.totalorder %s370, %s371
    %p380 = scmp.eq.s32.totalorder %s35, 0
    %p381 = por %p379, %p380
    %p382 = scmp.ne.s32.totalorder %s370, %s371
    %p383 = scmp.eq.s32.totalorder %s36, 1
    %p384 = por %p382, %p383
    %p386 = scmp.ne.s32.totalorder %s371, %s385
    %p387 = scmp.eq.s32.totalorder %s36, 0
    %p388 = por %p386, %p387
    %s390 = sadd.s32 %s389, 1
    %p393 = scmp.eq.s32.totalorder %s30, 1
    %p394 = scmp.ne.s32.totalorder %s389, %s391
    %p395 = scmp.eq.s32.totalorder %s30, 0
    %p396 = por %p394, %p395
    %p397 = scmp.ne.s32.totalorder %s389, %s391
    %p398 = scmp.eq.s32.totalorder %s35, 1
    %p399 = por %p397, %p398
    %p400 = scmp.ne.s32.totalorder %s391, %s392
    %p401 = scmp.eq.s32.totalorder %s35, 0
    %p402 = por %p400, %p401
    %p403 = scmp.ne.s32.totalorder %s391, %s392
    %p404 = scmp.eq.s32.totalorder %s36, 1
    %p405 = por %p403, %p404
    %p407 = scmp.ne.s32.totalorder %s392, %s406
    %p408 = scmp.eq.s32.totalorder %s36, 0
    %p409 = por %p407, %p408
    %s410 = ssub.s32 %s30, %s37
    %p411 = scmp.eq.s32.totalorder %s410, 0
    %s413 = sadd.s32 %s412, 1
    %s414 = scalar_select %p411, %s412, %s413
    %p417 = pneg %p411
    %p418 = scmp.eq.s32.totalorder %s30, 1
    %p419 = por %p417, %p418
    %p420 = scmp.ne.s32.totalorder %s412, %s415
    %p421 = scmp.eq.s32.totalorder %s30, 0
    %p422 = por %p420, %p421
    %p423 = scmp.ne.s32.totalorder %s412, %s415
    %p424 = scmp.eq.s32.totalorder %s35, 1
    %p425 = por %p423, %p424
    %p426 = scmp.ne.s32.totalorder %s415, %s416
    %p427 = scmp.eq.s32.totalorder %s35, 0
    %p428 = por %p426, %p427
    %p429 = scmp.ne.s32.totalorder %s415, %s416
    %p430 = scmp.eq.s32.totalorder %s36, 1
    %p431 = por %p429, %p430
    %p433 = scmp.ne.s32.totalorder %s416, %s432
    %p434 = scmp.eq.s32.totalorder %s36, 0
    %p435 = por %p433, %p434
    %p436 = scmp.le.s32.totalorder 1, %s30
    %p437 = scmp.lt.s32.totalorder %s30, 3
    %p438 = pnand %p436, %p437
    %p439 = pneg %p438
    // Predicated region
    $region9: #{_forward_groups.1} parent=5 // pred_check
      _
    $region10: #{_forward_groups.1} parent=5 // pred_check_branch
      %441 = sbr.rel (%p438) target = $region12
    $region11: #{_forward_groups.1} parent=5 // pred_region
      %s442 = ssub.s32 %s30, 1
      // Predicated region
      $region13: #{_forward_groups.1} parent=11 // pred_check
        %p443 = pneg %p129
      $region14: #{_forward_groups.1} parent=11 // pred_check_branch
        %445 = sbr.rel (%p443) target = $region16
      $region15: #{_forward_groups.1} parent=11 // pred_region
        _
      $region16: #{_forward_groups.1} parent=11 // pred_fallthru
        _
      // Predicated region
      $region17: #{_forward_groups.1} parent=11 // pred_check
        %p446 = pneg %p150
      $region18: #{_forward_groups.1} parent=11 // pred_check_branch
        %448 = sbr.rel (%p446) target = $region20
      $region19: #{_forward_groups.1} parent=11 // pred_region
        _
      $region20: #{_forward_groups.1} parent=11 // pred_fallthru
        _
      // Predicated region
      $region21: #{_forward_groups.1} parent=11 // pred_check
        %p449 = pneg %p171
      $region22: #{_forward_groups.1} parent=11 // pred_check_branch
        %451 = sbr.rel (%p449) target = $region24
      $region23: #{_forward_groups.1} parent=11 // pred_region
        _
      $region24: #{_forward_groups.1} parent=11 // pred_fallthru
        _
      // Predicated region
      $region25: #{_forward_groups.1} parent=11 // pred_check
        %p452 = pneg %p192
      $region26: #{_forward_groups.1} parent=11 // pred_check_branch
        %454 = sbr.rel (%p452) target = $region28
      $region27: #{_forward_groups.1} parent=11 // pred_region
        _
      $region28: #{_forward_groups.1} parent=11 // pred_fallthru
        _
      // Predicated region
      $region29: #{_forward_groups.1} parent=11 // pred_check
        %p455 = pneg %p213
      $region30: #{_forward_groups.1} parent=11 // pred_check_branch
        %457 = sbr.rel (%p455) target = $region32
      $region31: #{_forward_groups.1} parent=11 // pred_region
        _
      $region32: #{_forward_groups.1} parent=11 // pred_fallthru
        _
      // Predicated region
      $region33: #{_forward_groups.1} parent=11 // pred_check
        %p458 = pneg %p234
      $region34: #{_forward_groups.1} parent=11 // pred_check_branch
        %460 = sbr.rel (%p458) target = $region36
      $region35: #{_forward_groups.1} parent=11 // pred_region
        _
      $region36: #{_forward_groups.1} parent=11 // pred_fallthru
        _
      // Predicated region
      $region37: #{_forward_groups.1} parent=11 // pred_check
        %p461 = pneg %p255
      $region38: #{_forward_groups.1} parent=11 // pred_check_branch
        %463 = sbr.rel (%p461) target = $region40
      $region39: #{_forward_groups.1} parent=11 // pred_region
        _
      $region40: #{_forward_groups.1} parent=11 // pred_fallthru
        _
      // Predicated region
      $region41: #{_forward_groups.1} parent=11 // pred_check
        %p464 = pneg %p276
      $region42: #{_forward_groups.1} parent=11 // pred_check_branch
        %466 = sbr.rel (%p464) target = $region44
      $region43: #{_forward_groups.1} parent=11 // pred_region
        _
      $region44: #{_forward_groups.1} parent=11 // pred_fallthru
        _
      // Predicated region
      $region45: #{_forward_groups.1} parent=11 // pred_check
        %p467 = pneg %p297
      $region46: #{_forward_groups.1} parent=11 // pred_check_branch
        %469 = sbr.rel (%p467) target = $region48
      $region47: #{_forward_groups.1} parent=11 // pred_region
        _
      $region48: #{_forward_groups.1} parent=11 // pred_fallthru
        _
      // Predicated region
      $region49: #{_forward_groups.1} parent=11 // pred_check
        %p470 = pneg %p318
      $region50: #{_forward_groups.1} parent=11 // pred_check_branch
        %472 = sbr.rel (%p470) target = $region52
      $region51: #{_forward_groups.1} parent=11 // pred_region
        _
      $region52: #{_forward_groups.1} parent=11 // pred_fallthru
        _
      // Predicated region
      $region53: #{_forward_groups.1} parent=11 // pred_check
        %p473 = pneg %p339
      $region54: #{_forward_groups.1} parent=11 // pred_check_branch
        %475 = sbr.rel (%p473) target = $region56
      $region55: #{_forward_groups.1} parent=11 // pred_region
        _
      $region56: #{_forward_groups.1} parent=11 // pred_fallthru
        _
      // Predicated region
      $region57: #{_forward_groups.1} parent=11 // pred_check
        %p476 = pneg %p360
      $region58: #{_forward_groups.1} parent=11 // pred_check_branch
        %478 = sbr.rel (%p476) target = $region60
      $region59: #{_forward_groups.1} parent=11 // pred_region
        _
      $region60: #{_forward_groups.1} parent=11 // pred_fallthru
        _
      // Predicated region
      $region61: #{_forward_groups.1} parent=11 // pred_check
        %p479 = pneg %p381
      $region62: #{_forward_groups.1} parent=11 // pred_check_branch
        %481 = sbr.rel (%p479) target = $region64
      $region63: #{_forward_groups.1} parent=11 // pred_region
        _
      $region64: #{_forward_groups.1} parent=11 // pred_fallthru
        _
      // Predicated region
      $region65: #{_forward_groups.1} parent=11 // pred_check
        %p482 = pneg %p402
      $region66: #{_forward_groups.1} parent=11 // pred_check_branch
        %484 = sbr.rel (%p482) target = $region68
      $region67: #{_forward_groups.1} parent=11 // pred_region
        _
      $region68: #{_forward_groups.1} parent=11 // pred_fallthru
        _
    $region12: #{_forward_groups.1} parent=5 // pred_fallthru
      _
    %p485 = scmp.lt.s32.totalorder %s30, 2
    // Predicated region
    $region69: #{_forward_groups.1} parent=5 // pred_check
      %p486 = pneg %p485
    $region70: #{_forward_groups.1} parent=5 // pred_check_branch
      %488 = sbr.rel (%p486) target = $region72
    $region71: #{_forward_groups.1} parent=5 // pred_region
      // Predicated region
      $region73: #{_forward_groups.1} parent=71 // pred_check
        %p489 = pneg %p50
      $region74: #{_forward_groups.1} parent=71 // pred_check_branch
        %491 = sbr.rel (%p489) target = $region76
      $region75: #{_forward_groups.1} parent=71 // pred_region
        %p492 = scmp.lt.s32.totalorder %s30, 1
        %s493 = scalar_select %p492, %s30, 1
        %s494 = smul.addr %s493, 4
        %s495 = smul.addr %s494, 8
        %s496 = scalar_lea.vmem %s1, %s495
      $region76: #{_forward_groups.1} parent=71 // pred_fallthru
        _
      // Predicated region
      $region77: #{_forward_groups.1} parent=71 // pred_check
        %p497 = pneg %p76
      $region78: #{_forward_groups.1} parent=71 // pred_check_branch
        %499 = sbr.rel (%p497) target = $region80
      $region79: #{_forward_groups.1} parent=71 // pred_region
        %p500 = scmp.lt.s32.totalorder %s30, 1
        %s501 = scalar_select %p500, %s30, 1
        %s502 = smul.addr %s501, 2
        %s503 = scalar_lea.vmem %s2, %s502
      $region80: #{_forward_groups.1} parent=71 // pred_fallthru
        _
      // Predicated region
      $region81: #{_forward_groups.1} parent=71 // pred_check
        %p504 = pneg %p102
      $region82: #{_forward_groups.1} parent=71 // pred_check_branch
        %506 = sbr.rel (%p504) target = $region84
      $region83: #{_forward_groups.1} parent=71 // pred_region
        %p507 = scmp.lt.s32.totalorder %s30, 1
        %s508 = scalar_select %p507, %s30, 1
        %s509 = smul.addr %s508, 8
        %s510 = scalar_lea.vmem %s3, %s509
      $region84: #{_forward_groups.1} parent=71 // pred_fallthru
        _
    $region72: #{_forward_groups.1} parent=5 // pred_fallthru
      _
    %p511 = scmp.le.s32.totalorder 1, %s30
    %p512 = scmp.lt.s32.totalorder %s30, 3
    %p513 = pnand %p511, %p512
    %p514 = pneg %p513
    // Predicated region
    $region85: #{_forward_groups.1} parent=5 // pred_check
      _
    $region86: #{_forward_groups.1} parent=5 // pred_check_branch
      %516 = sbr.rel (%p513) target = $region88
    $region87: #{_forward_groups.1} parent=5 // pred_region
      %s517 = ssub.s32 %s30, 1
      %p518 = scmp.lt.s32.totalorder %s35, 1
      %s519 = scalar_select %p518, %s35, 1
      %s520 = smul.addr %s519, 4
      %s521 = smul.addr %s520, 8
      %s522 = scalar_lea.vmem %s1, %s521
      %p523 = pneg %p56
      %p524 = pneg %p53
      %p525 = scmp.lt.s32.totalorder %s35, 1
      %s526 = scalar_select %p525, %s35, 1
      %s527 = smul.addr %s526, 2
      %s528 = scalar_lea.vmem %s2, %s527
      %p529 = pneg %p82
      %p530 = pneg %p79
      %p531 = scmp.lt.s32.totalorder %s35, 1
      %s532 = scalar_select %p531, %s35, 1
      %s533 = smul.addr %s532, 8
      %s534 = scalar_lea.vmem %s3, %s533
      %p535 = pneg %p108
      %p536 = pneg %p105
      %p537 = pneg %p129
      %p538 = pneg %p126
      %p539 = pneg %p150
      %p540 = pneg %p147
      %p541 = pneg %p171
      %p542 = pneg %p168
      %p543 = pneg %p192
      %p544 = pneg %p189
      %p545 = pneg %p213
      %p546 = pneg %p210
      %p547 = pneg %p234
      %p548 = pneg %p231
      %p549 = pneg %p255
      %p550 = pneg %p252
      %p551 = pneg %p276
      %p552 = pneg %p273
      %p553 = pneg %p297
      %p554 = pneg %p294
      %p555 = pneg %p318
      %p556 = pneg %p315
      %p557 = pneg %p339
      %p558 = pneg %p336
      %p559 = pneg %p360
      %p560 = pneg %p357
      %p561 = pneg %p381
      %p562 = pneg %p378
      %p563 = pneg %p402
      %p564 = pneg %p399
      %p565 = pneg %p428
      %p566 = pneg %p425
      %p567 = scmp.lt.s32.totalorder %s35, 1
      %s568 = scalar_select %p567, %s35, 1
      %s569 = smul.addr %s568, 2
      %s570 = scalar_lea.vmem %s18, %s569
      %p571 = scmp.lt.s32.totalorder %s35, 1
      %s572 = scalar_select %p571, %s35, 1
      %s573 = smul.addr %s572, 4
      %s574 = smul.addr %s573, 8
      %s575 = scalar_lea.vmem %s1, %s574
      %p576 = scmp.lt.s32.totalorder %s35, 1
      %s577 = scalar_select %p576, %s35, 1
      %s578 = smul.addr %s577, 2
      %s579 = scalar_lea.vmem %s2, %s578
      %p580 = scmp.lt.s32.totalorder %s35, 1
      %s581 = scalar_select %p580, %s35, 1
      %s582 = smul.addr %s581, 8
      %s583 = scalar_lea.vmem %s3, %s582
      %p584 = scmp.lt.s32.totalorder %s35, 1
      %s585 = scalar_select %p584, %s35, 1
      %s586 = smul.addr %s585, 2
      %s587 = scalar_lea.vmem %s18, %s586
      %s588 = sld [smem:[#allocation4 + %s35]]
      %v589 = vld [vmem:[%s583] sm:$0xff]
      %v590 = vld [vmem:[%s4] sm:$0xff]
      %v591 = vld [vmem:[%s4 + $0x8] sm:$0xff]
      %v592 = vld [vmem:[%s4 + $0x10] sm:$0xff]
      %v593 = vld [vmem:[%s4 + $0x18] sm:$0xff]
      %v594 = vld [vmem:[%s5] sm:$0x1]
      %v596 = vlaneseq
      %v597 = vshrl.u32 %v596, 7
      %v598 = vsub.s32 0, %v597
      %v599 = vrot.slane %v594, %v598
      %vm601 = vcmask 261120
      %v603 = vsel %vm601, %v589, 0
      %605 = vmatprep.subr.mxu0 0.0
      %606 = vmatpush1.msra.mxu0 0.0
      %607 = vmatprep.subr.mxu0 0.0
      %608 = vmatpush1.msra.mxu0 0.0
      %609 = vmatprep.subr.mxu0 0.0
      %610 = vmatpush1.msra.mxu0 0.0
      %611 = vmatprep.subr.mxu0 0.0
      %612 = vmatpush1.msra.mxu0 0.0
      %613 = vmatprep.subr.mxu0 0.0
      %614 = vmatpush1.msra.mxu0 0.0
      %615 = vmatprep.subr.mxu0 0.0
      %616 = vmatpush1.msra.mxu0 0.0
      %617 = vmatprep.subr.mxu0 0.0
      %618 = vmatpush1.msra.mxu0 0.0
      %619 = vmatprep.subr.mxu0 0.0
      %620 = vmatpush1.msra.mxu0 0.0
      %621 = vmatprep.subr.mxu0 0.0
      %622 = vmatpush1.msra.mxu0 0.0
      %623 = vmatprep.subr.mxu0 0.0
      %624 = vmatpush1.msra.mxu0 0.0
      %625 = vmatprep.subr.mxu0 0.0
      %626 = vmatpush1.msra.mxu0 0.0
      %627 = vmatprep.subr.mxu0 0.0
      %628 = vmatpush1.msra.mxu0 0.0
      %629 = vmatprep.subr.mxu0 0.0
      %630 = vmatpush1.msra.mxu0 %v593
      %631 = vmatprep.subr.mxu0 0.0
      %632 = vmatpush1.msra.mxu0 %v592
      %633 = vmatprep.subr.mxu0 0.0
      %634 = vmatpush1.msra.mxu0 %v591
      %635 = vmatprep.subr.mxu0 0.0
      %636 = vmatpush1.msra.mxu0 %v590
      %637 = vmatprep.subr.mxu0 0.0
      %638 = vmatpush2.msra.mxu0 0.0
      %639 = vmatprep.subr.mxu0 0.0
      %640 = vmatpush2.msra.mxu0 0.0
      %641 = vmatprep.subr.mxu0 0.0
      %642 = vmatpush2.msra.mxu0 0.0
      %643 = vmatprep.subr.mxu0 0.0
      %644 = vmatpush2.msra.mxu0 0.0
      %645 = vmatprep.subr.mxu0 0.0
      %646 = vmatpush2.msra.mxu0 0.0
      %647 = vmatprep.subr.mxu0 0.0
      %648 = vmatpush2.msra.mxu0 0.0
      %649 = vmatprep.subr.mxu0 0.0
      %650 = vmatpush2.msra.mxu0 0.0
      %651 = vmatprep.subr.mxu0 0.0
      %652 = vmatpush2.msra.mxu0 0.0
      %653 = vmatprep.subr.mxu0 0.0
      %654 = vmatpush2.msra.mxu0 0.0
      %655 = vmatprep.subr.mxu0 0.0
      %656 = vmatpush2.msra.mxu0 0.0
      %657 = vmatprep.subr.mxu0 0.0
      %658 = vmatpush2.msra.mxu0 0.0
      %659 = vmatprep.subr.mxu0 0.0
      %660 = vmatpush2.msra.mxu0 0.0
      %661 = vmatprep.subr.mxu0 0.0
      %662 = vmatpush2.msra.mxu0 0.0
      %663 = vmatprep.subr.mxu0 0.0
      %664 = vmatpush2.msra.mxu0 0.0
      %665 = vmatprep.subr.mxu0 0.0
      %666 = vmatpush2.msra.mxu0 0.0
      %667 = vmatprep.subr.mxu0 0.0
      %668 = vmatpush2.msra.mxu0 0.0
      %669 = vmatprep.mubr.f32.mxu0 0.0
      %670 = vmatmul.mubr.f32.gmra.mxu0 %v603
      %v671 = vpop.f32.mrf.mxu0
      %v672 = vadd.f32 %v599, %v671
      %v673 = vpop.f32.mrf.mxu0
      %674 = vdwg.mxu0
      %v675 = vxor.u32 %v672, 2147483648
      %v676 = vmul.f32 %v675, 1.442695
      %v677 = vpow.pop %v676
      %v678 = vadd.f32 %v677, 1.0
      %v679 = vrcp.pop %v678
      %v680 = vmul.f32 1.0, %v679
      %v681 = vtanh.pop %v672
      %683 = vrot.lane.b32.xlu0 %v681, 32
      %v684 = vpop.permute.xlu0 %683
      %v686 = vmul.f32 %v680, %v684
      %v687 = vsel %vm601, %v672, %v686
      %vm688 = vcmask 523264
      %689 = vst.msk [vmem:[#allocation2] sm:$0xff] %vm688, %v687
      %690 = vst.msk [vmem:[#allocation2 + $0x8] sm:$0xff] %vm688, 0.0
      %691 = vst.msk [vmem:[#allocation2 + $0x10] sm:$0xff] %vm688, 0.0
      %v692 = vld [vmem:[%s6] sm:$0xff]
      %v693 = vld [vmem:[%s6 + $0x8] sm:$0xff]
      %v694 = vld [vmem:[%s6 + $0x10] sm:$0xff]
      %v695 = vld [vmem:[%s6 + $0x18] sm:$0xff]
      %v696 = vld [vmem:[%s7] sm:$0xff]
      %v697 = vld [vmem:[%s7 + $0x8] sm:$0xff]
      %v698 = vld [vmem:[%s7 + $0x10] sm:$0xff]
      %v699 = vld [vmem:[%s7 + $0x18] sm:$0xff]
      %v700 = vld [vmem:[%s9] sm:$0xff]
      %v701 = vld [vmem:[%s9 + $0x8] sm:$0xff]
      %v702 = vld [vmem:[%s9 + $0x10] sm:$0xff]
      %v703 = vld [vmem:[%s9 + $0x18] sm:$0xff]
      %v704 = vld [vmem:[%s11] sm:$0xff]
      %v705 = vld [vmem:[%s11 + $0x8] sm:$0xff]
      %v706 = vld [vmem:[%s11 + $0x10] sm:$0xff]
      %v707 = vld [vmem:[%s11 + $0x18] sm:$0xff]
      %v708 = vld [vmem:[%s13] sm:$0xff]
      %v709 = vld [vmem:[%s13 + $0x8] sm:$0xff]
      %v710 = vld [vmem:[%s13 + $0x10] sm:$0xff]
      %v711 = vld [vmem:[%s13 + $0x18] sm:$0xff]
      %v712 = vld [vmem:[%s16] sm:$0xff]
      %v713 = vld [vmem:[%s16 + $0x8] sm:$0xff]
      %v714 = vld [vmem:[%s16 + $0x10] sm:$0xff]
      %v715 = vld [vmem:[%s16 + $0x18] sm:$0xff]
      %v716 = vld [vmem:[%s16 + $0x20] sm:$0xff]
      %v717 = vld [vmem:[%s16 + $0x28] sm:$0xff]
      %v718 = vld [vmem:[%s16 + $0x30] sm:$0xff]
      %v719 = vld [vmem:[%s16 + $0x38] sm:$0xff]
      %v720 = vld [vmem:[%s8] sm:$0x1]
      %v722 = vlaneseq
      %v723 = vshrl.u32 %v722, 7
      %v724 = vsub.s32 0, %v723
      %v725 = vrot.slane %v720, %v724
      %v727 = vld [vmem:[%s10] sm:$0x1]
      %v729 = vlaneseq
      %v730 = vshrl.u32 %v729, 7
      %v731 = vsub.s32 0, %v730
      %v732 = vrot.slane %v727, %v731
      %v734 = vld [vmem:[%s14] sm:$0x1]
      %v736 = vlaneseq
      %v737 = vshrl.u32 %v736, 7
      %v738 = vsub.s32 0, %v737
      %v739 = vrot.slane %v734, %v738
      %v741 = vld [vmem:[%s12] sm:$0x1]
      %v743 = vlaneseq
      %v744 = vshrl.u32 %v743, 7
      %v745 = vsub.s32 0, %v744
      %v746 = vrot.slane %v741, %v745
      %v748 = vld [vmem:[%s17] sm:$0x1]
      %v750 = vlaneseq
      %v751 = vshrl.u32 %v750, 7
      %v752 = vsub.s32 0, %v751
      %v753 = vrot.slane %v748, %v752
      %v755 = vld [vmem:[%s15] sm:$0x1]
      %v757 = vlaneseq
      %v758 = vshrl.u32 %v757, 7
      %v759 = vsub.s32 0, %v758
      %v760 = vrot.slane %v755, %v759
      %v762 = vld [vmem:[%s575] sm:$0xff]
      %v763 = vld [vmem:[%s575 + $0x8] sm:$0xff]
      %v764 = vld [vmem:[%s575 + $0x10] sm:$0xff]
      %v765 = vld [vmem:[%s575 + $0x18] sm:$0xff]
      %v766 = vlaneseq
      %v767 = vand.u32 %v766, 127
      %p768 = scmp.gt.s32.totalorder %s588, 0
      // Predicated region
      $region89: #{_forward_groups.1} parent=87 // pred_check
        %p769 = pneg %p768
      $region90: #{_forward_groups.1} parent=87 // pred_check_branch
        %771 = sbr.rel (%p769) target = $region92
      $region91: #{_forward_groups.1} parent=87 // pred_region
        %772 = vset.pattern.permute.xlu0 0
        %773 = vperm.xlu0 %772, %v762
        %v774 = vpop.permute.xlu0 %773
        %775 = vset.pattern.permute.xlu0 0
        %776 = vperm.xlu0 %775, %v763
        %v777 = vpop.permute.xlu0 %776
        %vm778 = vcmp.eq.s32.totalorder %v767, %v774
        %vm779 = vcmp.eq.s32.totalorder %v767, %v777
        %v780 = vsel %vm778, 1, 0
        %v781 = vsel %vm779, 1, 0
        %v782 = vcvt.s32.f32 %v780
        %v783 = vcvt.s32.f32 %v781
        %v784 = vld [vmem:[#allocation2] sm:$0xff]
        %v785 = vld [vmem:[#allocation2 + $0x8] sm:$0xff]
        %v786 = vld [vmem:[#allocation2 + $0x10] sm:$0xff]
        %vm787 = vcmask 195584
        %v789 = vsel %vm787, %v782, 0
        %v792 = vsel %vm787, %v783, 0
        %794 = vmatprep.subr.mxu0 0.0
        %795 = vmatpush1.msra.mxu0 0.0
        %796 = vmatprep.subr.mxu0 0.0
        %797 = vmatpush1.msra.mxu0 0.0
        %798 = vmatprep.subr.mxu0 0.0
        %799 = vmatpush1.msra.mxu0 0.0
        %800 = vmatprep.subr.mxu0 0.0
        %801 = vmatpush1.msra.mxu0 0.0
        %802 = vmatprep.subr.mxu0 0.0
        %803 = vmatpush1.msra.mxu0 0.0
        %804 = vmatprep.subr.mxu0 0.0
        %805 = vmatpush1.msra.mxu0 0.0
        %806 = vmatprep.subr.mxu0 0.0
        %807 = vmatpush1.msra.mxu0 0.0
        %808 = vmatprep.subr.mxu0 0.0
        %809 = vmatpush1.msra.mxu0 0.0
        %810 = vmatprep.subr.mxu0 0.0
        %811 = vmatpush1.msra.mxu0 0.0
        %812 = vmatprep.subr.mxu0 0.0
        %813 = vmatpush1.msra.mxu0 0.0
        %814 = vmatprep.subr.mxu0 0.0
        %815 = vmatpush1.msra.mxu0 0.0
        %816 = vmatprep.subr.mxu0 0.0
        %817 = vmatpush1.msra.mxu0 0.0
        %818 = vmatprep.subr.mxu0 0.0
        %819 = vmatpush1.msra.mxu0 0.0
        %820 = vmatprep.subr.mxu0 0.0
        %821 = vmatpush1.msra.mxu0 %v786
        %822 = vmatprep.subr.mxu0 0.0
        %823 = vmatpush1.msra.mxu0 %v785
        %824 = vmatprep.subr.mxu0 0.0
        %825 = vmatpush1.msra.mxu0 %v784
        %826 = vmatprep.subr.mxu0 0.0
        %827 = vmatpush2.msra.mxu0 0.0
        %828 = vmatprep.subr.mxu0 0.0
        %829 = vmatpush2.msra.mxu0 0.0
        %830 = vmatprep.subr.mxu0 0.0
        %831 = vmatpush2.msra.mxu0 0.0
        %832 = vmatprep.subr.mxu0 0.0
        %833 = vmatpush2.msra.mxu0 0.0
        %834 = vmatprep.subr.mxu0 0.0
        %835 = vmatpush2.msra.mxu0 0.0
        %836 = vmatprep.subr.mxu0 0.0
        %837 = vmatpush2.msra.mxu0 0.0
        %838 = vmatprep.subr.mxu0 0.0
        %839 = vmatpush2.msra.mxu0 0.0
        %840 = vmatprep.subr.mxu0 0.0
        %841 = vmatpush2.msra.mxu0 0.0
        %842 = vmatprep.subr.mxu0 0.0
        %843 = vmatpush2.msra.mxu0 0.0
        %844 = vmatprep.subr.mxu0 0.0
        %845 = vmatpush2.msra.mxu0 0.0
        %846 = vmatprep.subr.mxu0 0.0
        %847 = vmatpush2.msra.mxu0 0.0
        %848 = vmatprep.subr.mxu0 0.0
        %849 = vmatpush2.msra.mxu0 0.0
        %850 = vmatprep.subr.mxu0 0.0
        %851 = vmatpush2.msra.mxu0 0.0
        %852 = vmatprep.subr.mxu0 0.0
        %853 = vmatpush2.msra.mxu0 0.0
        %854 = vmatprep.subr.mxu0 0.0
        %855 = vmatpush2.msra.mxu0 0.0
        %856 = vmatprep.subr.mxu0 0.0
        %857 = vmatpush2.msra.mxu0 0.0
        %858 = vmatprep.mubr.f32.mxu0 0.0
        %859 = vmatmul.mubr.f32.gmra.mxu0 %v789
        %v860 = vpop.f32.mrf.mxu0
        %v861 = vadd.f32 0.0, %v860
        %v862 = vpop.f32.mrf.mxu0
        %863 = vmatprep.mubr.f32.mxu0 0.0
        %864 = vmatmul.mubr.f32.gmra.mxu0 %v792
        %v865 = vpop.f32.mrf.mxu0
        %v866 = vadd.f32 0.0, %v865
        %v867 = vpop.f32.mrf.mxu0
        %868 = vdwg.mxu0
        %871 = vrot.lane.b32.xlu0 %v861, 96
        %v872 = vpop.permute.xlu0 %871
        %873 = vrot.lane.b32.xlu0 %v866, 96
        %v874 = vpop.permute.xlu0 %873
        %v875 = vsel %vm601, %v872, 0
        %v877 = vsel %vm601, %v874, 0
        %879 = vmatprep.subr.mxu0 0.0
        %880 = vmatpush1.msra.mxu0 0.0
        %881 = vmatprep.subr.mxu0 0.0
        %882 = vmatpush1.msra.mxu0 0.0
        %883 = vmatprep.subr.mxu0 0.0
        %884 = vmatpush1.msra.mxu0 0.0
        %885 = vmatprep.subr.mxu0 0.0
        %886 = vmatpush1.msra.mxu0 0.0
        %887 = vmatprep.subr.mxu0 0.0
        %888 = vmatpush1.msra.mxu0 0.0
        %889 = vmatprep.subr.mxu0 0.0
        %890 = vmatpush1.msra.mxu0 0.0
        %891 = vmatprep.subr.mxu0 0.0
        %892 = vmatpush1.msra.mxu0 0.0
        %893 = vmatprep.subr.mxu0 0.0
        %894 = vmatpush1.msra.mxu0 0.0
        %895 = vmatprep.subr.mxu0 0.0
        %896 = vmatpush1.msra.mxu0 0.0
        %897 = vmatprep.subr.mxu0 0.0
        %898 = vmatpush1.msra.mxu0 0.0
        %899 = vmatprep.subr.mxu0 0.0
        %900 = vmatpush1.msra.mxu0 0.0
        %901 = vmatprep.subr.mxu0 0.0
        %902 = vmatpush1.msra.mxu0 0.0
        %903 = vmatprep.subr.mxu0 0.0
        %904 = vmatpush1.msra.mxu0 %v695
        %905 = vmatprep.subr.mxu0 0.0
        %906 = vmatpush1.msra.mxu0 %v694
        %907 = vmatprep.subr.mxu0 0.0
        %908 = vmatpush1.msra.mxu0 %v693
        %909 = vmatprep.subr.mxu0 0.0
        %910 = vmatpush1.msra.mxu0 %v692
        %911 = vmatprep.subr.mxu0 0.0
        %912 = vmatpush2.msra.mxu0 0.0
        %913 = vmatprep.subr.mxu0 0.0
        %914 = vmatpush2.msra.mxu0 0.0
        %915 = vmatprep.subr.mxu0 0.0
        %916 = vmatpush2.msra.mxu0 0.0
        %917 = vmatprep.subr.mxu0 0.0
        %918 = vmatpush2.msra.mxu0 0.0
        %919 = vmatprep.subr.mxu0 0.0
        %920 = vmatpush2.msra.mxu0 0.0
        %921 = vmatprep.subr.mxu0 0.0
        %922 = vmatpush2.msra.mxu0 0.0
        %923 = vmatprep.subr.mxu0 0.0
        %924 = vmatpush2.msra.mxu0 0.0
        %925 = vmatprep.subr.mxu0 0.0
        %926 = vmatpush2.msra.mxu0 0.0
        %927 = vmatprep.subr.mxu0 0.0
        %928 = vmatpush2.msra.mxu0 0.0
        %929 = vmatprep.subr.mxu0 0.0
        %930 = vmatpush2.msra.mxu0 0.0
        %931 = vmatprep.subr.mxu0 0.0
        %932 = vmatpush2.msra.mxu0 0.0
        %933 = vmatprep.subr.mxu0 0.0
        %934 = vmatpush2.msra.mxu0 0.0
        %935 = vmatprep.subr.mxu0 0.0
        %936 = vmatpush2.msra.mxu0 0.0
        %937 = vmatprep.subr.mxu0 0.0
        %938 = vmatpush2.msra.mxu0 0.0
        %939 = vmatprep.subr.mxu0 0.0
        %940 = vmatpush2.msra.mxu0 0.0
        %941 = vmatprep.subr.mxu0 0.0
        %942 = vmatpush2.msra.mxu0 0.0
        %943 = vmatprep.mubr.f32.mxu0 0.0
        %944 = vmatmul.mubr.f32.gmra.mxu0 %v875
        %v945 = vpop.f32.mrf.mxu0
        %v946 = vadd.f32 %v725, %v945
        %v947 = vpop.f32.mrf.mxu0
        %948 = vmatprep.mubr.f32.mxu0 0.0
        %949 = vmatmul.mubr.f32.gmra.mxu0 %v877
        %v950 = vpop.f32.mrf.mxu0
        %v951 = vadd.f32 %v725, %v950
        %v952 = vpop.f32.mrf.mxu0
        %953 = vdwg.mxu0
        %v954 = vxor.u32 %v946, 2147483648
        %v955 = vmul.f32 %v954, 1.442695
        %v956 = vpow.pop %v955
        %v957 = vadd.f32 %v956, 1.0
        %v958 = vrcp.pop %v957
        %v959 = vmul.f32 1.0, %v958
        %v960 = vtanh.pop %v946
        %962 = vrot.lane.b32.xlu0 %v960, 64
        %v963 = vpop.permute.xlu0 %962
        %v965 = vmul.f32 %v959, %v963
        %v966 = vtanh.pop %v965
        %968 = vrot.lane.b32.xlu0 %v966, 96
        %v969 = vpop.permute.xlu0 %968
        %v971 = vmul.f32 %v959, %v969
        %973 = vrot.lane.b32.xlu0 %v971, 32
        %v974 = vpop.permute.xlu0 %973
        %v975 = vsel %vm601, %v974, 0
        %977 = vmatprep.subr.mxu0 0.0
        %978 = vmatpush1.msra.mxu0 0.0
        %979 = vmatprep.subr.mxu0 0.0
        %980 = vmatpush1.msra.mxu0 0.0
        %981 = vmatprep.subr.mxu0 0.0
        %982 = vmatpush1.msra.mxu0 0.0
        %983 = vmatprep.subr.mxu0 0.0
        %984 = vmatpush1.msra.mxu0 0.0
        %985 = vmatprep.subr.mxu0 0.0
        %986 = vmatpush1.msra.mxu0 0.0
        %987 = vmatprep.subr.mxu0 0.0
        %988 = vmatpush1.msra.mxu0 0.0
        %989 = vmatprep.subr.mxu0 0.0
        %990 = vmatpush1.msra.mxu0 0.0
        %991 = vmatprep.subr.mxu0 0.0
        %992 = vmatpush1.msra.mxu0 0.0
        %993 = vmatprep.subr.mxu0 0.0
        %994 = vmatpush1.msra.mxu0 0.0
        %995 = vmatprep.subr.mxu0 0.0
        %996 = vmatpush1.msra.mxu0 0.0
        %997 = vmatprep.subr.mxu0 0.0
        %998 = vmatpush1.msra.mxu0 0.0
        %999 = vmatprep.subr.mxu0 0.0
        %1000 = vmatpush1.msra.mxu0 0.0
        %1001 = vmatprep.subr.mxu0 0.0
        %1002 = vmatpush1.msra.mxu0 %v699
        %1003 = vmatprep.subr.mxu0 0.0
        %1004 = vmatpush1.msra.mxu0 %v698
        %1005 = vmatprep.subr.mxu0 0.0
        %1006 = vmatpush1.msra.mxu0 %v697
        %1007 = vmatprep.subr.mxu0 0.0
        %1008 = vmatpush1.msra.mxu0 %v696
        %1009 = vmatprep.subr.mxu0 0.0
        %1010 = vmatpush2.msra.mxu0 0.0
        %1011 = vmatprep.subr.mxu0 0.0
        %1012 = vmatpush2.msra.mxu0 0.0
        %1013 = vmatprep.subr.mxu0 0.0
        %1014 = vmatpush2.msra.mxu0 0.0
        %1015 = vmatprep.subr.mxu0 0.0
        %1016 = vmatpush2.msra.mxu0 0.0
        %1017 = vmatprep.subr.mxu0 0.0
        %1018 = vmatpush2.msra.mxu0 0.0
        %1019 = vmatprep.subr.mxu0 0.0
        %1020 = vmatpush2.msra.mxu0 0.0
        %1021 = vmatprep.subr.mxu0 0.0
        %1022 = vmatpush2.msra.mxu0 0.0
        %1023 = vmatprep.subr.mxu0 0.0
        %1024 = vmatpush2.msra.mxu0 0.0
        %1025 = vmatprep.subr.mxu0 0.0
        %1026 = vmatpush2.msra.mxu0 0.0
        %1027 = vmatprep.subr.mxu0 0.0
        %1028 = vmatpush2.msra.mxu0 0.0
        %1029 = vmatprep.subr.mxu0 0.0
        %1030 = vmatpush2.msra.mxu0 0.0
        %1031 = vmatprep.subr.mxu0 0.0
        %1032 = vmatpush2.msra.mxu0 0.0
        %1033 = vmatprep.subr.mxu0 0.0
        %1034 = vmatpush2.msra.mxu0 0.0
        %1035 = vmatprep.subr.mxu0 0.0
        %1036 = vmatpush2.msra.mxu0 0.0
        %1037 = vmatprep.subr.mxu0 0.0
        %1038 = vmatpush2.msra.mxu0 0.0
        %1039 = vmatprep.subr.mxu0 0.0
        %1040 = vmatpush2.msra.mxu0 0.0
        %1041 = vmatprep.mubr.f32.mxu0 0.0
        %1042 = vmatmul.mubr.f32.gmra.mxu0 %v975
        %v1043 = vpop.f32.mrf.mxu0
        %v1044 = vadd.f32 0.0, %v1043
        %v1045 = vpop.f32.mrf.mxu0
        %1046 = vdwg.mxu0
        %v1047 = vadd.f32 %v951, %v1044
        %v1048 = vxor.u32 %v1047, 2147483648
        %v1049 = vmul.f32 %v1048, 1.442695
        %v1050 = vpow.pop %v1049
        %v1051 = vadd.f32 %v1050, 1.0
        %v1052 = vrcp.pop %v1051
        %v1053 = vmul.f32 1.0, %v1052
        %v1054 = vtanh.pop %v1047
        %1056 = vrot.lane.b32.xlu0 %v965, 32
        %v1057 = vpop.permute.xlu0 %1056
        %v1059 = vmul.f32 %v1053, %v1057
        %1061 = vrot.lane.b32.xlu0 %v1054, 64
        %v1062 = vpop.permute.xlu0 %1061
        %v1064 = vmul.f32 %v1053, %v1062
        %1066 = vrot.lane.b32.xlu0 %v1064, 32
        %v1067 = vpop.permute.xlu0 %1066
        %v1069 = vadd.f32 %v1059, %v1067
        %v1070 = vtanh.pop %v1069
        %1072 = vrot.lane.b32.xlu0 %v1070, 64
        %v1073 = vpop.permute.xlu0 %1072
        %v1075 = vmul.f32 %v1053, %v1073
        %1077 = vrot.lane.b32.xlu0 %v1075, 32
        %v1078 = vpop.permute.xlu0 %1077
        %v1079 = vsel %vm601, %v1078, 0
        %1081 = vmatprep.subr.mxu0 0.0
        %1082 = vmatpush1.msra.mxu0 0.0
        %1083 = vmatprep.subr.mxu0 0.0
        %1084 = vmatpush1.msra.mxu0 0.0
        %1085 = vmatprep.subr.mxu0 0.0
        %1086 = vmatpush1.msra.mxu0 0.0
        %1087 = vmatprep.subr.mxu0 0.0
        %1088 = vmatpush1.msra.mxu0 0.0
        %1089 = vmatprep.subr.mxu0 0.0
        %1090 = vmatpush1.msra.mxu0 0.0
        %1091 = vmatprep.subr.mxu0 0.0
        %1092 = vmatpush1.msra.mxu0 0.0
        %1093 = vmatprep.subr.mxu0 0.0
        %1094 = vmatpush1.msra.mxu0 0.0
        %1095 = vmatprep.subr.mxu0 0.0
        %1096 = vmatpush1.msra.mxu0 0.0
        %1097 = vmatprep.subr.mxu0 0.0
        %1098 = vmatpush1.msra.mxu0 0.0
        %1099 = vmatprep.subr.mxu0 0.0
        %1100 = vmatpush1.msra.mxu0 0.0
        %1101 = vmatprep.subr.mxu0 0.0
        %1102 = vmatpush1.msra.mxu0 0.0
        %1103 = vmatprep.subr.mxu0 0.0
        %1104 = vmatpush1.msra.mxu0 0.0
        %1105 = vmatprep.subr.mxu0 0.0
        %1106 = vmatpush1.msra.mxu0 %v707
        %1107 = vmatprep.subr.mxu0 0.0
        %1108 = vmatpush1.msra.mxu0 %v706
        %1109 = vmatprep.subr.mxu0 0.0
        %1110 = vmatpush1.msra.mxu0 %v705
        %1111 = vmatprep.subr.mxu0 0.0
        %1112 = vmatpush1.msra.mxu0 %v704
        %1113 = vmatprep.subr.mxu0 0.0
        %1114 = vmatpush2.msra.mxu0 0.0
        %1115 = vmatprep.subr.mxu0 0.0
        %1116 = vmatpush2.msra.mxu0 0.0
        %1117 = vmatprep.subr.mxu0 0.0
        %1118 = vmatpush2.msra.mxu0 0.0
        %1119 = vmatprep.subr.mxu0 0.0
        %1120 = vmatpush2.msra.mxu0 0.0
        %1121 = vmatprep.subr.mxu0 0.0
        %1122 = vmatpush2.msra.mxu0 0.0
        %1123 = vmatprep.subr.mxu0 0.0
        %1124 = vmatpush2.msra.mxu0 0.0
        %1125 = vmatprep.subr.mxu0 0.0
        %1126 = vmatpush2.msra.mxu0 0.0
        %1127 = vmatprep.subr.mxu0 0.0
        %1128 = vmatpush2.msra.mxu0 0.0
        %1129 = vmatprep.subr.mxu0 0.0
        %1130 = vmatpush2.msra.mxu0 0.0
        %1131 = vmatprep.subr.mxu0 0.0
        %1132 = vmatpush2.msra.mxu0 0.0
        %1133 = vmatprep.subr.mxu0 0.0
        %1134 = vmatpush2.msra.mxu0 0.0
        %1135 = vmatprep.subr.mxu0 0.0
        %1136 = vmatpush2.msra.mxu0 0.0
        %1137 = vmatprep.subr.mxu0 0.0
        %1138 = vmatpush2.msra.mxu0 0.0
        %1139 = vmatprep.subr.mxu0 0.0
        %1140 = vmatpush2.msra.mxu0 0.0
        %1141 = vmatprep.subr.mxu0 0.0
        %1142 = vmatpush2.msra.mxu0 0.0
        %1143 = vmatprep.subr.mxu0 0.0
        %1144 = vmatpush2.msra.mxu0 0.0
        %1145 = vmatprep.mubr.f32.mxu0 0.0
        %1146 = vmatmul.mubr.f32.gmra.mxu0 %v1079
        %v1147 = vpop.f32.mrf.mxu0
        %v1148 = vadd.f32 %v746, %v1147
        %v1149 = vpop.f32.mrf.mxu0
        %1150 = vdwg.mxu0
        %1151 = vmatprep.subr.mxu0 0.0
        %1152 = vmatpush1.msra.mxu0 0.0
        %1153 = vmatprep.subr.mxu0 0.0
        %1154 = vmatpush1.msra.mxu0 0.0
        %1155 = vmatprep.subr.mxu0 0.0
        %1156 = vmatpush1.msra.mxu0 0.0
        %1157 = vmatprep.subr.mxu0 0.0
        %1158 = vmatpush1.msra.mxu0 0.0
        %1159 = vmatprep.subr.mxu0 0.0
        %1160 = vmatpush1.msra.mxu0 0.0
        %1161 = vmatprep.subr.mxu0 0.0
        %1162 = vmatpush1.msra.mxu0 0.0
        %1163 = vmatprep.subr.mxu0 0.0
        %1164 = vmatpush1.msra.mxu0 0.0
        %1165 = vmatprep.subr.mxu0 0.0
        %1166 = vmatpush1.msra.mxu0 0.0
        %1167 = vmatprep.subr.mxu0 0.0
        %1168 = vmatpush1.msra.mxu0 0.0
        %1169 = vmatprep.subr.mxu0 0.0
        %1170 = vmatpush1.msra.mxu0 0.0
        %1171 = vmatprep.subr.mxu0 0.0
        %1172 = vmatpush1.msra.mxu0 0.0
        %1173 = vmatprep.subr.mxu0 0.0
        %1174 = vmatpush1.msra.mxu0 0.0
        %1175 = vmatprep.subr.mxu0 0.0
        %1176 = vmatpush1.msra.mxu0 %v703
        %1177 = vmatprep.subr.mxu0 0.0
        %1178 = vmatpush1.msra.mxu0 %v702
        %1179 = vmatprep.subr.mxu0 0.0
        %1180 = vmatpush1.msra.mxu0 %v701
        %1181 = vmatprep.subr.mxu0 0.0
        %1182 = vmatpush1.msra.mxu0 %v700
        %1183 = vmatprep.subr.mxu0 0.0
        %1184 = vmatpush2.msra.mxu0 0.0
        %1185 = vmatprep.subr.mxu0 0.0
        %1186 = vmatpush2.msra.mxu0 0.0
        %1187 = vmatprep.subr.mxu0 0.0
        %1188 = vmatpush2.msra.mxu0 0.0
        %1189 = vmatprep.subr.mxu0 0.0
        %1190 = vmatpush2.msra.mxu0 0.0
        %1191 = vmatprep.subr.mxu0 0.0
        %1192 = vmatpush2.msra.mxu0 0.0
        %1193 = vmatprep.subr.mxu0 0.0
        %1194 = vmatpush2.msra.mxu0 0.0
        %1195 = vmatprep.subr.mxu0 0.0
        %1196 = vmatpush2.msra.mxu0 0.0
        %1197 = vmatprep.subr.mxu0 0.0
        %1198 = vmatpush2.msra.mxu0 0.0
        %1199 = vmatprep.subr.mxu0 0.0
        %1200 = vmatpush2.msra.mxu0 0.0
        %1201 = vmatprep.subr.mxu0 0.0
        %1202 = vmatpush2.msra.mxu0 0.0
        %1203 = vmatprep.subr.mxu0 0.0
        %1204 = vmatpush2.msra.mxu0 0.0
        %1205 = vmatprep.subr.mxu0 0.0
        %1206 = vmatpush2.msra.mxu0 0.0
        %1207 = vmatprep.subr.mxu0 0.0
        %1208 = vmatpush2.msra.mxu0 0.0
        %1209 = vmatprep.subr.mxu0 0.0
        %1210 = vmatpush2.msra.mxu0 0.0
        %1211 = vmatprep.subr.mxu0 0.0
        %1212 = vmatpush2.msra.mxu0 0.0
        %1213 = vmatprep.subr.mxu0 0.0
        %1214 = vmatpush2.msra.mxu0 0.0
        %1215 = vmatprep.mubr.f32.mxu0 0.0
        %1216 = vmatmul.mubr.f32.gmra.mxu0 %v875
        %v1217 = vpop.f32.mrf.mxu0
        %v1218 = vadd.f32 %v732, %v1217
        %v1219 = vpop.f32.mrf.mxu0
        %1220 = vmatprep.mubr.f32.mxu0 0.0
        %1221 = vmatmul.mubr.f32.gmra.mxu0 %v877
        %v1222 = vpop.f32.mrf.mxu0
        %v1223 = vadd.f32 %v732, %v1222
        %v1224 = vpop.f32.mrf.mxu0
        %1225 = vdwg.mxu0
        %v1226 = vadd.f32 %v1218, %v1148
        %v1227 = vtanh.pop %v1226
        %v1228 = vadd.f32 %v1223, %v1148
        %v1229 = vtanh.pop %v1228
        %v1230 = vmul.f32 %v760, %v1227
        %v1231 = vsel %vm601, %v1230, 0.0
        %1232 = vadd.xlane.f32.xlu0 %v1231
        %v1233 = vpop.xlane.xlu0 %1232
        %v1234 = vmul.f32 %v760, %v1229
        %v1235 = vsel %vm601, %v1234, 0.0
        %1236 = vadd.xlane.f32.xlu0 %v1235
        %v1237 = vpop.xlane.xlu0 %1236
        %v1238 = vadd.f32 %v1233, %v1237
        %v1239 = vrcp.pop %v1238
        %v1240 = vmul.f32 %v1233, %v1239
        %v1241 = vmul.f32 %v1240, %v861
        %v1242 = vmul.f32 %v1237, %v1239
        %v1243 = vmul.f32 %v1242, %v866
        %1246 = vrot.lane.b32.xlu0 %v1241, 96
        %v1247 = vpop.permute.xlu0 %1246
        %1248 = vrot.lane.b32.xlu0 %v1243, 96
        %v1249 = vpop.permute.xlu0 %1248
        %v1250 = vsel %vm601, %v1247, 0
        %v1252 = vsel %vm601, %v1249, 0
        %1254 = vmatprep.subr.mxu0 0.0
        %1255 = vmatpush1.msra.mxu0 0.0
        %1256 = vmatprep.subr.mxu0 0.0
        %1257 = vmatpush1.msra.mxu0 0.0
        %1258 = vmatprep.subr.mxu0 0.0
        %1259 = vmatpush1.msra.mxu0 0.0
        %1260 = vmatprep.subr.mxu0 0.0
        %1261 = vmatpush1.msra.mxu0 0.0
        %1262 = vmatprep.subr.mxu0 0.0
        %1263 = vmatpush1.msra.mxu0 0.0
        %1264 = vmatprep.subr.mxu0 0.0
        %1265 = vmatpush1.msra.mxu0 0.0
        %1266 = vmatprep.subr.mxu0 0.0
        %1267 = vmatpush1.msra.mxu0 0.0
        %1268 = vmatprep.subr.mxu0 0.0
        %1269 = vmatpush1.msra.mxu0 0.0
        %1270 = vmatprep.subr.mxu0 0.0
        %1271 = vmatpush1.msra.mxu0 0.0
        %1272 = vmatprep.subr.mxu0 0.0
        %1273 = vmatpush1.msra.mxu0 0.0
        %1274 = vmatprep.subr.mxu0 0.0
        %1275 = vmatpush1.msra.mxu0 0.0
        %1276 = vmatprep.subr.mxu0 0.0
        %1277 = vmatpush1.msra.mxu0 0.0
        %1278 = vmatprep.subr.mxu0 0.0
        %1279 = vmatpush1.msra.mxu0 %v711
        %1280 = vmatprep.subr.mxu0 0.0
        %1281 = vmatpush1.msra.mxu0 %v710
        %1282 = vmatprep.subr.mxu0 0.0
        %1283 = vmatpush1.msra.mxu0 %v709
        %1284 = vmatprep.subr.mxu0 0.0
        %1285 = vmatpush1.msra.mxu0 %v708
        %1286 = vmatprep.subr.mxu0 0.0
        %1287 = vmatpush2.msra.mxu0 0.0
        %1288 = vmatprep.subr.mxu0 0.0
        %1289 = vmatpush2.msra.mxu0 0.0
        %1290 = vmatprep.subr.mxu0 0.0
        %1291 = vmatpush2.msra.mxu0 0.0
        %1292 = vmatprep.subr.mxu0 0.0
        %1293 = vmatpush2.msra.mxu0 0.0
        %1294 = vmatprep.subr.mxu0 0.0
        %1295 = vmatpush2.msra.mxu0 0.0
        %1296 = vmatprep.subr.mxu0 0.0
        %1297 = vmatpush2.msra.mxu0 0.0
        %1298 = vmatprep.subr.mxu0 0.0
        %1299 = vmatpush2.msra.mxu0 0.0
        %1300 = vmatprep.subr.mxu0 0.0
        %1301 = vmatpush2.msra.mxu0 0.0
        %1302 = vmatprep.subr.mxu0 0.0
        %1303 = vmatpush2.msra.mxu0 0.0
        %1304 = vmatprep.subr.mxu0 0.0
        %1305 = vmatpush2.msra.mxu0 0.0
        %1306 = vmatprep.subr.mxu0 0.0
        %1307 = vmatpush2.msra.mxu0 0.0
        %1308 = vmatprep.subr.mxu0 0.0
        %1309 = vmatpush2.msra.mxu0 0.0
        %1310 = vmatprep.subr.mxu0 0.0
        %1311 = vmatpush2.msra.mxu0 0.0
        %1312 = vmatprep.subr.mxu0 0.0
        %1313 = vmatpush2.msra.mxu0 0.0
        %1314 = vmatprep.subr.mxu0 0.0
        %1315 = vmatpush2.msra.mxu0 0.0
        %1316 = vmatprep.subr.mxu0 0.0
        %1317 = vmatpush2.msra.mxu0 0.0
        %1318 = vmatprep.mubr.f32.mxu0 0.0
        %1319 = vmatmul.mubr.f32.gmra.mxu0 %v1250
        %v1320 = vpop.f32.mrf.mxu0
        %v1321 = vadd.f32 %v739, %v1320
        %v1322 = vpop.f32.mrf.mxu0
        %1323 = vmatprep.mubr.f32.mxu0 0.0
        %1324 = vmatmul.mubr.f32.gmra.mxu0 %v1252
        %v1325 = vpop.f32.mrf.mxu0
        %v1326 = vadd.f32 %v739, %v1325
        %v1327 = vpop.f32.mrf.mxu0
        %1328 = vdwg.mxu0
        %v1329 = vtanh.pop %v1321
        %v1330 = vtanh.pop %v1326
        %1332 = vrot.lane.b32.xlu0 %v1330, 32
        %v1333 = vpop.permute.xlu0 %1332
        %v1335 = vsel %vm601, %v1329, %v1333
        %v1337 = vsel %vm688, %v1335, 0
        %1339 = vmatprep.subr.mxu0 0.0
        %1340 = vmatpush1.msra.mxu0 0.0
        %1341 = vmatprep.subr.mxu0 0.0
        %1342 = vmatpush1.msra.mxu0 0.0
        %1343 = vmatprep.subr.mxu0 0.0
        %1344 = vmatpush1.msra.mxu0 0.0
        %1345 = vmatprep.subr.mxu0 0.0
        %1346 = vmatpush1.msra.mxu0 0.0
        %1347 = vmatprep.subr.mxu0 0.0
        %1348 = vmatpush1.msra.mxu0 0.0
        %1349 = vmatprep.subr.mxu0 0.0
        %1350 = vmatpush1.msra.mxu0 0.0
        %1351 = vmatprep.subr.mxu0 0.0
        %1352 = vmatpush1.msra.mxu0 0.0
        %1353 = vmatprep.subr.mxu0 0.0
        %1354 = vmatpush1.msra.mxu0 0.0
        %1355 = vmatprep.subr.mxu0 0.0
        %1356 = vmatpush1.msra.mxu0 %v719
        %1357 = vmatprep.subr.mxu0 0.0
        %1358 = vmatpush1.msra.mxu0 %v718
        %1359 = vmatprep.subr.mxu0 0.0
        %1360 = vmatpush1.msra.mxu0 %v717
        %1361 = vmatprep.subr.mxu0 0.0
        %1362 = vmatpush1.msra.mxu0 %v716
        %1363 = vmatprep.subr.mxu0 0.0
        %1364 = vmatpush1.msra.mxu0 %v715
        %1365 = vmatprep.subr.mxu0 0.0
        %1366 = vmatpush1.msra.mxu0 %v714
        %1367 = vmatprep.subr.mxu0 0.0
        %1368 = vmatpush1.msra.mxu0 %v713
        %1369 = vmatprep.subr.mxu0 0.0
        %1370 = vmatpush1.msra.mxu0 %v712
        %1371 = vmatprep.subr.mxu0 0.0
        %1372 = vmatpush2.msra.mxu0 0.0
        %1373 = vmatprep.subr.mxu0 0.0
        %1374 = vmatpush2.msra.mxu0 0.0
        %1375 = vmatprep.subr.mxu0 0.0
        %1376 = vmatpush2.msra.mxu0 0.0
        %1377 = vmatprep.subr.mxu0 0.0
        %1378 = vmatpush2.msra.mxu0 0.0
        %1379 = vmatprep.subr.mxu0 0.0
        %1380 = vmatpush2.msra.mxu0 0.0
        %1381 = vmatprep.subr.mxu0 0.0
        %1382 = vmatpush2.msra.mxu0 0.0
        %1383 = vmatprep.subr.mxu0 0.0
        %1384 = vmatpush2.msra.mxu0 0.0
        %1385 = vmatprep.subr.mxu0 0.0
        %1386 = vmatpush2.msra.mxu0 0.0
        %1387 = vmatprep.subr.mxu0 0.0
        %1388 = vmatpush2.msra.mxu0 0.0
        %1389 = vmatprep.subr.mxu0 0.0
        %1390 = vmatpush2.msra.mxu0 0.0
        %1391 = vmatprep.subr.mxu0 0.0
        %1392 = vmatpush2.msra.mxu0 0.0
        %1393 = vmatprep.subr.mxu0 0.0
        %1394 = vmatpush2.msra.mxu0 0.0
        %1395 = vmatprep.subr.mxu0 0.0
        %1396 = vmatpush2.msra.mxu0 0.0
        %1397 = vmatprep.subr.mxu0 0.0
        %1398 = vmatpush2.msra.mxu0 0.0
        %1399 = vmatprep.subr.mxu0 0.0
        %1400 = vmatpush2.msra.mxu0 0.0
        %1401 = vmatprep.subr.mxu0 0.0
        %1402 = vmatpush2.msra.mxu0 0.0
        %1403 = vmatprep.mubr.f32.mxu0 0.0
        %1404 = vmatmul.mubr.f32.gmra.mxu0 %v1337
        %v1405 = vpop.f32.mrf.mxu0
        %v1406 = vadd.f32 %v753, %v1405
        %v1407 = vpop.f32.mrf.mxu0
        %1408 = vdwg.mxu0
        %v1409 = vxor.u32 %v1406, 2147483648
        %v1410 = vmul.f32 %v1409, 1.442695
        %v1411 = vpow.pop %v1410
        %v1412 = vadd.f32 %v1411, 1.0
        %v1413 = vrcp.pop %v1412
        %v1414 = vmul.f32 1.0, %v1413
        %v1415 = vtanh.pop %v1406
        %1417 = vrot.lane.b32.xlu0 %v1415, 32
        %v1418 = vpop.permute.xlu0 %1417
        %v1420 = vmul.f32 %v1414, %v1418
        %1421 = vrot.lane.b32.xlu0 %v861, 32
        %v1422 = vpop.permute.xlu0 %1421
        %v1424 = vmul.f32 %v1414, %v1422
        %1426 = vrot.lane.b32.xlu0 %v1424, 96
        %v1427 = vpop.permute.xlu0 %1426
        %v1429 = vadd.f32 %v1420, %v1427
        %1430 = vrot.lane.b32.xlu0 %v866, 64
        %v1431 = vpop.permute.xlu0 %1430
        %v1433 = vmul.f32 %v1414, %v1431
        %1435 = vrot.lane.b32.xlu0 %v1433, 64
        %v1436 = vpop.permute.xlu0 %1435
        %v1438 = vadd.f32 %v1429, %v1436
        %v1439 = vtanh.pop %v1438
        %1441 = vrot.lane.b32.xlu0 %v1439, 32
        %v1442 = vpop.permute.xlu0 %1441
        %v1444 = vsel %vm601, %v1438, %v1442
        %vm1445 = vcmp.ge.s32.totalorder %v762, 0
        %v1446 = vsel %vm1445, 1, 0
        %1447 = vset.pattern.permute.xlu0 0
        %1448 = vperm.xlu0 %1447, %v1446
        %v1449 = vpop.permute.xlu0 %1448
        %vm1450 = vcmp.eq.s32.totalorder %v1449, 1
        %v1451 = vsel %vm1450, %v1444, 0.0
        %1452 = vst.msk [vmem:[#allocation2 + $0x8] sm:$0xff] %vm688, %v1451
      $region92: #{_forward_groups.1} parent=87 // pred_fallthru
        _
      %p1453 = scmp.gt.s32.totalorder %s588, 1
      // Predicated region
      $region93: #{_forward_groups.1} parent=87 // pred_check
        %p1454 = pneg %p1453
      $region94: #{_forward_groups.1} parent=87 // pred_check_branch
        %1456 = sbr.rel (%p1454) target = $region96
      $region95: #{_forward_groups.1} parent=87 // pred_region
        %1457 = vset.pattern.permute.xlu0 0
        %1458 = vperm.xlu0 %1457, %v764
        %v1459 = vpop.permute.xlu0 %1458
        %1460 = vset.pattern.permute.xlu0 0
        %1461 = vperm.xlu0 %1460, %v765
        %v1462 = vpop.permute.xlu0 %1461
        %vm1463 = vcmp.eq.s32.totalorder %v767, %v1459
        %vm1464 = vcmp.eq.s32.totalorder %v767, %v1462
        %v1465 = vsel %vm1463, 1, 0
        %v1466 = vsel %vm1464, 1, 0
        %v1467 = vcvt.s32.f32 %v1465
        %v1468 = vcvt.s32.f32 %v1466
        %v1469 = vld [vmem:[#allocation2] sm:$0xff]
        %v1470 = vld [vmem:[#allocation2 + $0x8] sm:$0xff]
        %v1471 = vld [vmem:[#allocation2 + $0x10] sm:$0xff]
        %vm1472 = vcmask 195584
        %v1474 = vsel %vm1472, %v1467, 0
        %v1477 = vsel %vm1472, %v1468, 0
        %1479 = vmatprep.subr.mxu0 0.0
        %1480 = vmatpush1.msra.mxu0 0.0
        %1481 = vmatprep.subr.mxu0 0.0
        %1482 = vmatpush1.msra.mxu0 0.0
        %1483 = vmatprep.subr.mxu0 0.0
        %1484 = vmatpush1.msra.mxu0 0.0
        %1485 = vmatprep.subr.mxu0 0.0
        %1486 = vmatpush1.msra.mxu0 0.0
        %1487 = vmatprep.subr.mxu0 0.0
        %1488 = vmatpush1.msra.mxu0 0.0
        %1489 = vmatprep.subr.mxu0 0.0
        %1490 = vmatpush1.msra.mxu0 0.0
        %1491 = vmatprep.subr.mxu0 0.0
        %1492 = vmatpush1.msra.mxu0 0.0
        %1493 = vmatprep.subr.mxu0 0.0
        %1494 = vmatpush1.msra.mxu0 0.0
        %1495 = vmatprep.subr.mxu0 0.0
        %1496 = vmatpush1.msra.mxu0 0.0
        %1497 = vmatprep.subr.mxu0 0.0
        %1498 = vmatpush1.msra.mxu0 0.0
        %1499 = vmatprep.subr.mxu0 0.0
        %1500 = vmatpush1.msra.mxu0 0.0
        %1501 = vmatprep.subr.mxu0 0.0
        %1502 = vmatpush1.msra.mxu0 0.0
        %1503 = vmatprep.subr.mxu0 0.0
        %1504 = vmatpush1.msra.mxu0 0.0
        %1505 = vmatprep.subr.mxu0 0.0
        %1506 = vmatpush1.msra.mxu0 %v1471
        %1507 = vmatprep.subr.mxu0 0.0
        %1508 = vmatpush1.msra.mxu0 %v1470
        %1509 = vmatprep.subr.mxu0 0.0
        %1510 = vmatpush1.msra.mxu0 %v1469
        %1511 = vmatprep.subr.mxu0 0.0
        %1512 = vmatpush2.msra.mxu0 0.0
        %1513 = vmatprep.subr.mxu0 0.0
        %1514 = vmatpush2.msra.mxu0 0.0
        %1515 = vmatprep.subr.mxu0 0.0
        %1516 = vmatpush2.msra.mxu0 0.0
        %1517 = vmatprep.subr.mxu0 0.0
        %1518 = vmatpush2.msra.mxu0 0.0
        %1519 = vmatprep.subr.mxu0 0.0
        %1520 = vmatpush2.msra.mxu0 0.0
        %1521 = vmatprep.subr.mxu0 0.0
        %1522 = vmatpush2.msra.mxu0 0.0
        %1523 = vmatprep.subr.mxu0 0.0
        %1524 = vmatpush2.msra.mxu0 0.0
        %1525 = vmatprep.subr.mxu0 0.0
        %1526 = vmatpush2.msra.mxu0 0.0
        %1527 = vmatprep.subr.mxu0 0.0
        %1528 = vmatpush2.msra.mxu0 0.0
        %1529 = vmatprep.subr.mxu0 0.0
        %1530 = vmatpush2.msra.mxu0 0.0
        %1531 = vmatprep.subr.mxu0 0.0
        %1532 = vmatpush2.msra.mxu0 0.0
        %1533 = vmatprep.subr.mxu0 0.0
        %1534 = vmatpush2.msra.mxu0 0.0
        %1535 = vmatprep.subr.mxu0 0.0
        %1536 = vmatpush2.msra.mxu0 0.0
        %1537 = vmatprep.subr.mxu0 0.0
        %1538 = vmatpush2.msra.mxu0 0.0
        %1539 = vmatprep.subr.mxu0 0.0
        %1540 = vmatpush2.msra.mxu0 0.0
        %1541 = vmatprep.subr.mxu0 0.0
        %1542 = vmatpush2.msra.mxu0 0.0
        %1543 = vmatprep.mubr.f32.mxu0 0.0
        %1544 = vmatmul.mubr.f32.gmra.mxu0 %v1474
        %v1545 = vpop.f32.mrf.mxu0
        %v1546 = vadd.f32 0.0, %v1545
        %v1547 = vpop.f32.mrf.mxu0
        %1548 = vmatprep.mubr.f32.mxu0 0.0
        %1549 = vmatmul.mubr.f32.gmra.mxu0 %v1477
        %v1550 = vpop.f32.mrf.mxu0
        %v1551 = vadd.f32 0.0, %v1550
        %v1552 = vpop.f32.mrf.mxu0
        %1553 = vdwg.mxu0
        %1556 = vrot.lane.b32.xlu0 %v1546, 96
        %v1557 = vpop.permute.xlu0 %1556
        %1558 = vrot.lane.b32.xlu0 %v1551, 96
        %v1559 = vpop.permute.xlu0 %1558
        %v1560 = vsel %vm601, %v1557, 0
        %v1562 = vsel %vm601, %v1559, 0
        %1564 = vmatprep.subr.mxu0 0.0
        %1565 = vmatpush1.msra.mxu0 0.0
        %1566 = vmatprep.subr.mxu0 0.0
        %1567 = vmatpush1.msra.mxu0 0.0
        %1568 = vmatprep.subr.mxu0 0.0
        %1569 = vmatpush1.msra.mxu0 0.0
        %1570 = vmatprep.subr.mxu0 0.0
        %1571 = vmatpush1.msra.mxu0 0.0
        %1572 = vmatprep.subr.mxu0 0.0
        %1573 = vmatpush1.msra.mxu0 0.0
        %1574 = vmatprep.subr.mxu0 0.0
        %1575 = vmatpush1.msra.mxu0 0.0
        %1576 = vmatprep.subr.mxu0 0.0
        %1577 = vmatpush1.msra.mxu0 0.0
        %1578 = vmatprep.subr.mxu0 0.0
        %1579 = vmatpush1.msra.mxu0 0.0
        %1580 = vmatprep.subr.mxu0 0.0
        %1581 = vmatpush1.msra.mxu0 0.0
        %1582 = vmatprep.subr.mxu0 0.0
        %1583 = vmatpush1.msra.mxu0 0.0
        %1584 = vmatprep.subr.mxu0 0.0
        %1585 = vmatpush1.msra.mxu0 0.0
        %1586 = vmatprep.subr.mxu0 0.0
        %1587 = vmatpush1.msra.mxu0 0.0
        %1588 = vmatprep.subr.mxu0 0.0
        %1589 = vmatpush1.msra.mxu0 %v695
        %1590 = vmatprep.subr.mxu0 0.0
        %1591 = vmatpush1.msra.mxu0 %v694
        %1592 = vmatprep.subr.mxu0 0.0
        %1593 = vmatpush1.msra.mxu0 %v693
        %1594 = vmatprep.subr.mxu0 0.0
        %1595 = vmatpush1.msra.mxu0 %v692
        %1596 = vmatprep.subr.mxu0 0.0
        %1597 = vmatpush2.msra.mxu0 0.0
        %1598 = vmatprep.subr.mxu0 0.0
        %1599 = vmatpush2.msra.mxu0 0.0
        %1600 = vmatprep.subr.mxu0 0.0
        %1601 = vmatpush2.msra.mxu0 0.0
        %1602 = vmatprep.subr.mxu0 0.0
        %1603 = vmatpush2.msra.mxu0 0.0
        %1604 = vmatprep.subr.mxu0 0.0
        %1605 = vmatpush2.msra.mxu0 0.0
        %1606 = vmatprep.subr.mxu0 0.0
        %1607 = vmatpush2.msra.mxu0 0.0
        %1608 = vmatprep.subr.mxu0 0.0
        %1609 = vmatpush2.msra.mxu0 0.0
        %1610 = vmatprep.subr.mxu0 0.0
        %1611 = vmatpush2.msra.mxu0 0.0
        %1612 = vmatprep.subr.mxu0 0.0
        %1613 = vmatpush2.msra.mxu0 0.0
        %1614 = vmatprep.subr.mxu0 0.0
        %1615 = vmatpush2.msra.mxu0 0.0
        %1616 = vmatprep.subr.mxu0 0.0
        %1617 = vmatpush2.msra.mxu0 0.0
        %1618 = vmatprep.subr.mxu0 0.0
        %1619 = vmatpush2.msra.mxu0 0.0
        %1620 = vmatprep.subr.mxu0 0.0
        %1621 = vmatpush2.msra.mxu0 0.0
        %1622 = vmatprep.subr.mxu0 0.0
        %1623 = vmatpush2.msra.mxu0 0.0
        %1624 = vmatprep.subr.mxu0 0.0
        %1625 = vmatpush2.msra.mxu0 0.0
        %1626 = vmatprep.subr.mxu0 0.0
        %1627 = vmatpush2.msra.mxu0 0.0
        %1628 = vmatprep.mubr.f32.mxu0 0.0
        %1629 = vmatmul.mubr.f32.gmra.mxu0 %v1560
        %v1630 = vpop.f32.mrf.mxu0
        %v1631 = vadd.f32 %v725, %v1630
        %v1632 = vpop.f32.mrf.mxu0
        %1633 = vmatprep.mubr.f32.mxu0 0.0
        %1634 = vmatmul.mubr.f32.gmra.mxu0 %v1562
        %v1635 = vpop.f32.mrf.mxu0
        %v1636 = vadd.f32 %v725, %v1635
        %v1637 = vpop.f32.mrf.mxu0
        %1638 = vdwg.mxu0
        %v1639 = vxor.u32 %v1631, 2147483648
        %v1640 = vmul.f32 %v1639, 1.442695
        %v1641 = vpow.pop %v1640
        %v1642 = vadd.f32 %v1641, 1.0
        %v1643 = vrcp.pop %v1642
        %v1644 = vmul.f32 1.0, %v1643
        %v1645 = vtanh.pop %v1631
        %1647 = vrot.lane.b32.xlu0 %v1645, 64
        %v1648 = vpop.permute.xlu0 %1647
        %v1650 = vmul.f32 %v1644, %v1648
        %v1651 = vtanh.pop %v1650
        %1653 = vrot.lane.b32.xlu0 %v1651, 96
        %v1654 = vpop.permute.xlu0 %1653
        %v1656 = vmul.f32 %v1644, %v1654
        %1658 = vrot.lane.b32.xlu0 %v1656, 32
        %v1659 = vpop.permute.xlu0 %1658
        %v1660 = vsel %vm601, %v1659, 0
        %1662 = vmatprep.subr.mxu0 0.0
        %1663 = vmatpush1.msra.mxu0 0.0
        %1664 = vmatprep.subr.mxu0 0.0
        %1665 = vmatpush1.msra.mxu0 0.0
        %1666 = vmatprep.subr.mxu0 0.0
        %1667 = vmatpush1.msra.mxu0 0.0
        %1668 = vmatprep.subr.mxu0 0.0
        %1669 = vmatpush1.msra.mxu0 0.0
        %1670 = vmatprep.subr.mxu0 0.0
        %1671 = vmatpush1.msra.mxu0 0.0
        %1672 = vmatprep.subr.mxu0 0.0
        %1673 = vmatpush1.msra.mxu0 0.0
        %1674 = vmatprep.subr.mxu0 0.0
        %1675 = vmatpush1.msra.mxu0 0.0
        %1676 = vmatprep.subr.mxu0 0.0
        %1677 = vmatpush1.msra.mxu0 0.0
        %1678 = vmatprep.subr.mxu0 0.0
        %1679 = vmatpush1.msra.mxu0 0.0
        %1680 = vmatprep.subr.mxu0 0.0
        %1681 = vmatpush1.msra.mxu0 0.0
        %1682 = vmatprep.subr.mxu0 0.0
        %1683 = vmatpush1.msra.mxu0 0.0
        %1684 = vmatprep.subr.mxu0 0.0
        %1685 = vmatpush1.msra.mxu0 0.0
        %1686 = vmatprep.subr.mxu0 0.0
        %1687 = vmatpush1.msra.mxu0 %v699
        %1688 = vmatprep.subr.mxu0 0.0
        %1689 = vmatpush1.msra.mxu0 %v698
        %1690 = vmatprep.subr.mxu0 0.0
        %1691 = vmatpush1.msra.mxu0 %v697
        %1692 = vmatprep.subr.mxu0 0.0
        %1693 = vmatpush1.msra.mxu0 %v696
        %1694 = vmatprep.subr.mxu0 0.0
        %1695 = vmatpush2.msra.mxu0 0.0
        %1696 = vmatprep.subr.mxu0 0.0
        %1697 = vmatpush2.msra.mxu0 0.0
        %1698 = vmatprep.subr.mxu0 0.0
        %1699 = vmatpush2.msra.mxu0 0.0
        %1700 = vmatprep.subr.mxu0 0.0
        %1701 = vmatpush2.msra.mxu0 0.0
        %1702 = vmatprep.subr.mxu0 0.0
        %1703 = vmatpush2.msra.mxu0 0.0
        %1704 = vmatprep.subr.mxu0 0.0
        %1705 = vmatpush2.msra.mxu0 0.0
        %1706 = vmatprep.subr.mxu0 0.0
        %1707 = vmatpush2.msra.mxu0 0.0
        %1708 = vmatprep.subr.mxu0 0.0
        %1709 = vmatpush2.msra.mxu0 0.0
        %1710 = vmatprep.subr.mxu0 0.0
        %1711 = vmatpush2.msra.mxu0 0.0
        %1712 = vmatprep.subr.mxu0 0.0
        %1713 = vmatpush2.msra.mxu0 0.0
        %1714 = vmatprep.subr.mxu0 0.0
        %1715 = vmatpush2.msra.mxu0 0.0
        %1716 = vmatprep.subr.mxu0 0.0
        %1717 = vmatpush2.msra.mxu0 0.0
        %1718 = vmatprep.subr.mxu0 0.0
        %1719 = vmatpush2.msra.mxu0 0.0
        %1720 = vmatprep.subr.mxu0 0.0
        %1721 = vmatpush2.msra.mxu0 0.0
        %1722 = vmatprep.subr.mxu0 0.0
        %1723 = vmatpush2.msra.mxu0 0.0
        %1724 = vmatprep.subr.mxu0 0.0
        %1725 = vmatpush2.msra.mxu0 0.0
        %1726 = vmatprep.mubr.f32.mxu0 0.0
        %1727 = vmatmul.mubr.f32.gmra.mxu0 %v1660
        %v1728 = vpop.f32.mrf.mxu0
        %v1729 = vadd.f32 0.0, %v1728
        %v1730 = vpop.f32.mrf.mxu0
        %1731 = vdwg.mxu0
        %v1732 = vadd.f32 %v1636, %v1729
        %v1733 = vxor.u32 %v1732, 2147483648
        %v1734 = vmul.f32 %v1733, 1.442695
        %v1735 = vpow.pop %v1734
        %v1736 = vadd.f32 %v1735, 1.0
        %v1737 = vrcp.pop %v1736
        %v1738 = vmul.f32 1.0, %v1737
        %v1739 = vtanh.pop %v1732
        %1741 = vrot.lane.b32.xlu0 %v1650, 32
        %v1742 = vpop.permute.xlu0 %1741
        %v1744 = vmul.f32 %v1738, %v1742
        %1746 = vrot.lane.b32.xlu0 %v1739, 64
        %v1747 = vpop.permute.xlu0 %1746
        %v1749 = vmul.f32 %v1738, %v1747
        %1751 = vrot.lane.b32.xlu0 %v1749, 32
        %v1752 = vpop.permute.xlu0 %1751
        %v1754 = vadd.f32 %v1744, %v1752
        %v1755 = vtanh.pop %v1754
        %1757 = vrot.lane.b32.xlu0 %v1755, 64
        %v1758 = vpop.permute.xlu0 %1757
        %v1760 = vmul.f32 %v1738, %v1758
        %1762 = vrot.lane.b32.xlu0 %v1760, 32
        %v1763 = vpop.permute.xlu0 %1762
        %v1764 = vsel %vm601, %v1763, 0
        %1766 = vmatprep.subr.mxu0 0.0
        %1767 = vmatpush1.msra.mxu0 0.0
        %1768 = vmatprep.subr.mxu0 0.0
        %1769 = vmatpush1.msra.mxu0 0.0
        %1770 = vmatprep.subr.mxu0 0.0
        %1771 = vmatpush1.msra.mxu0 0.0
        %1772 = vmatprep.subr.mxu0 0.0
        %1773 = vmatpush1.msra.mxu0 0.0
        %1774 = vmatprep.subr.mxu0 0.0
        %1775 = vmatpush1.msra.mxu0 0.0
        %1776 = vmatprep.subr.mxu0 0.0
        %1777 = vmatpush1.msra.mxu0 0.0
        %1778 = vmatprep.subr.mxu0 0.0
        %1779 = vmatpush1.msra.mxu0 0.0
        %1780 = vmatprep.subr.mxu0 0.0
        %1781 = vmatpush1.msra.mxu0 0.0
        %1782 = vmatprep.subr.mxu0 0.0
        %1783 = vmatpush1.msra.mxu0 0.0
        %1784 = vmatprep.subr.mxu0 0.0
        %1785 = vmatpush1.msra.mxu0 0.0
        %1786 = vmatprep.subr.mxu0 0.0
        %1787 = vmatpush1.msra.mxu0 0.0
        %1788 = vmatprep.subr.mxu0 0.0
        %1789 = vmatpush1.msra.mxu0 0.0
        %1790 = vmatprep.subr.mxu0 0.0
        %1791 = vmatpush1.msra.mxu0 %v707
        %1792 = vmatprep.subr.mxu0 0.0
        %1793 = vmatpush1.msra.mxu0 %v706
        %1794 = vmatprep.subr.mxu0 0.0
        %1795 = vmatpush1.msra.mxu0 %v705
        %1796 = vmatprep.subr.mxu0 0.0
        %1797 = vmatpush1.msra.mxu0 %v704
        %1798 = vmatprep.subr.mxu0 0.0
        %1799 = vmatpush2.msra.mxu0 0.0
        %1800 = vmatprep.subr.mxu0 0.0
        %1801 = vmatpush2.msra.mxu0 0.0
        %1802 = vmatprep.subr.mxu0 0.0
        %1803 = vmatpush2.msra.mxu0 0.0
        %1804 = vmatprep.subr.mxu0 0.0
        %1805 = vmatpush2.msra.mxu0 0.0
        %1806 = vmatprep.subr.mxu0 0.0
        %1807 = vmatpush2.msra.mxu0 0.0
        %1808 = vmatprep.subr.mxu0 0.0
        %1809 = vmatpush2.msra.mxu0 0.0
        %1810 = vmatprep.subr.mxu0 0.0
        %1811 = vmatpush2.msra.mxu0 0.0
        %1812 = vmatprep.subr.mxu0 0.0
        %1813 = vmatpush2.msra.mxu0 0.0
        %1814 = vmatprep.subr.mxu0 0.0
        %1815 = vmatpush2.msra.mxu0 0.0
        %1816 = vmatprep.subr.mxu0 0.0
        %1817 = vmatpush2.msra.mxu0 0.0
        %1818 = vmatprep.subr.mxu0 0.0
        %1819 = vmatpush2.msra.mxu0 0.0
        %1820 = vmatprep.subr.mxu0 0.0
        %1821 = vmatpush2.msra.mxu0 0.0
        %1822 = vmatprep.subr.mxu0 0.0
        %1823 = vmatpush2.msra.mxu0 0.0
        %1824 = vmatprep.subr.mxu0 0.0
        %1825 = vmatpush2.msra.mxu0 0.0
        %1826 = vmatprep.subr.mxu0 0.0
        %1827 = vmatpush2.msra.mxu0 0.0
        %1828 = vmatprep.subr.mxu0 0.0
        %1829 = vmatpush2.msra.mxu0 0.0
        %1830 = vmatprep.mubr.f32.mxu0 0.0
        %1831 = vmatmul.mubr.f32.gmra.mxu0 %v1764
        %v1832 = vpop.f32.mrf.mxu0
        %v1833 = vadd.f32 %v746, %v1832
        %v1834 = vpop.f32.mrf.mxu0
        %1835 = vdwg.mxu0
        %1836 = vmatprep.subr.mxu0 0.0
        %1837 = vmatpush1.msra.mxu0 0.0
        %1838 = vmatprep.subr.mxu0 0.0
        %1839 = vmatpush1.msra.mxu0 0.0
        %1840 = vmatprep.subr.mxu0 0.0
        %1841 = vmatpush1.msra.mxu0 0.0
        %1842 = vmatprep.subr.mxu0 0.0
        %1843 = vmatpush1.msra.mxu0 0.0
        %1844 = vmatprep.subr.mxu0 0.0
        %1845 = vmatpush1.msra.mxu0 0.0
        %1846 = vmatprep.subr.mxu0 0.0
        %1847 = vmatpush1.msra.mxu0 0.0
        %1848 = vmatprep.subr.mxu0 0.0
        %1849 = vmatpush1.msra.mxu0 0.0
        %1850 = vmatprep.subr.mxu0 0.0
        %1851 = vmatpush1.msra.mxu0 0.0
        %1852 = vmatprep.subr.mxu0 0.0
        %1853 = vmatpush1.msra.mxu0 0.0
        %1854 = vmatprep.subr.mxu0 0.0
        %1855 = vmatpush1.msra.mxu0 0.0
        %1856 = vmatprep.subr.mxu0 0.0
        %1857 = vmatpush1.msra.mxu0 0.0
        %1858 = vmatprep.subr.mxu0 0.0
        %1859 = vmatpush1.msra.mxu0 0.0
        %1860 = vmatprep.subr.mxu0 0.0
        %1861 = vmatpush1.msra.mxu0 %v703
        %1862 = vmatprep.subr.mxu0 0.0
        %1863 = vmatpush1.msra.mxu0 %v702
        %1864 = vmatprep.subr.mxu0 0.0
        %1865 = vmatpush1.msra.mxu0 %v701
        %1866 = vmatprep.subr.mxu0 0.0
        %1867 = vmatpush1.msra.mxu0 %v700
        %1868 = vmatprep.subr.mxu0 0.0
        %1869 = vmatpush2.msra.mxu0 0.0
        %1870 = vmatprep.subr.mxu0 0.0
        %1871 = vmatpush2.msra.mxu0 0.0
        %1872 = vmatprep.subr.mxu0 0.0
        %1873 = vmatpush2.msra.mxu0 0.0
        %1874 = vmatprep.subr.mxu0 0.0
        %1875 = vmatpush2.msra.mxu0 0.0
        %1876 = vmatprep.subr.mxu0 0.0
        %1877 = vmatpush2.msra.mxu0 0.0
        %1878 = vmatprep.subr.mxu0 0.0
        %1879 = vmatpush2.msra.mxu0 0.0
        %1880 = vmatprep.subr.mxu0 0.0
        %1881 = vmatpush2.msra.mxu0 0.0
        %1882 = vmatprep.subr.mxu0 0.0
        %1883 = vmatpush2.msra.mxu0 0.0
        %1884 = vmatprep.subr.mxu0 0.0
        %1885 = vmatpush2.msra.mxu0 0.0
        %1886 = vmatprep.subr.mxu0 0.0
        %1887 = vmatpush2.msra.mxu0 0.0
        %1888 = vmatprep.subr.mxu0 0.0
        %1889 = vmatpush2.msra.mxu0 0.0
        %1890 = vmatprep.subr.mxu0 0.0
        %1891 = vmatpush2.msra.mxu0 0.0
        %1892 = vmatprep.subr.mxu0 0.0
        %1893 = vmatpush2.msra.mxu0 0.0
        %1894 = vmatprep.subr.mxu0 0.0
        %1895 = vmatpush2.msra.mxu0 0.0
        %1896 = vmatprep.subr.mxu0 0.0
        %1897 = vmatpush2.msra.mxu0 0.0
        %1898 = vmatprep.subr.mxu0 0.0
        %1899 = vmatpush2.msra.mxu0 0.0
        %1900 = vmatprep.mubr.f32.mxu0 0.0
        %1901 = vmatmul.mubr.f32.gmra.mxu0 %v1560
        %v1902 = vpop.f32.mrf.mxu0
        %v1903 = vadd.f32 %v732, %v1902
        %v1904 = vpop.f32.mrf.mxu0
        %1905 = vmatprep.mubr.f32.mxu0 0.0
        %1906 = vmatmul.mubr.f32.gmra.mxu0 %v1562
        %v1907 = vpop.f32.mrf.mxu0
        %v1908 = vadd.f32 %v732, %v1907
        %v1909 = vpop.f32.mrf.mxu0
        %1910 = vdwg.mxu0
        %v1911 = vadd.f32 %v1903, %v1833
        %v1912 = vtanh.pop %v1911
        %v1913 = vadd.f32 %v1908, %v1833
        %v1914 = vtanh.pop %v1913
        %v1915 = vmul.f32 %v760, %v1912
        %v1916 = vsel %vm601, %v1915, 0.0
        %1917 = vadd.xlane.f32.xlu0 %v1916
        %v1918 = vpop.xlane.xlu0 %1917
        %v1919 = vmul.f32 %v760, %v1914
        %v1920 = vsel %vm601, %v1919, 0.0
        %1921 = vadd.xlane.f32.xlu0 %v1920
        %v1922 = vpop.xlane.xlu0 %1921
        %v1923 = vadd.f32 %v1918, %v1922
        %v1924 = vrcp.pop %v1923
        %v1925 = vmul.f32 %v1918, %v1924
        %v1926 = vmul.f32 %v1925, %v1546
        %v1927 = vmul.f32 %v1922, %v1924
        %v1928 = vmul.f32 %v1927, %v1551
        %1931 = vrot.lane.b32.xlu0 %v1926, 96
        %v1932 = vpop.permute.xlu0 %1931
        %1933 = vrot.lane.b32.xlu0 %v1928, 96
        %v1934 = vpop.permute.xlu0 %1933
        %v1935 = vsel %vm601, %v1932, 0
        %v1937 = vsel %vm601, %v1934, 0
        %1939 = vmatprep.subr.mxu0 0.0
        %1940 = vmatpush1.msra.mxu0 0.0
        %1941 = vmatprep.subr.mxu0 0.0
        %1942 = vmatpush1.msra.mxu0 0.0
        %1943 = vmatprep.subr.mxu0 0.0
        %1944 = vmatpush1.msra.mxu0 0.0
        %1945 = vmatprep.subr.mxu0 0.0
        %1946 = vmatpush1.msra.mxu0 0.0
        %1947 = vmatprep.subr.mxu0 0.0
        %1948 = vmatpush1.msra.mxu0 0.0
        %1949 = vmatprep.subr.mxu0 0.0
        %1950 = vmatpush1.msra.mxu0 0.0
        %1951 = vmatprep.subr.mxu0 0.0
        %1952 = vmatpush1.msra.mxu0 0.0
        %1953 = vmatprep.subr.mxu0 0.0
        %1954 = vmatpush1.msra.mxu0 0.0
        %1955 = vmatprep.subr.mxu0 0.0
        %1956 = vmatpush1.msra.mxu0 0.0
        %1957 = vmatprep.subr.mxu0 0.0
        %1958 = vmatpush1.msra.mxu0 0.0
        %1959 = vmatprep.subr.mxu0 0.0
        %1960 = vmatpush1.msra.mxu0 0.0
        %1961 = vmatprep.subr.mxu0 0.0
        %1962 = vmatpush1.msra.mxu0 0.0
        %1963 = vmatprep.subr.mxu0 0.0
        %1964 = vmatpush1.msra.mxu0 %v711
        %1965 = vmatprep.subr.mxu0 0.0
        %1966 = vmatpush1.msra.mxu0 %v710
        %1967 = vmatprep.subr.mxu0 0.0
        %1968 = vmatpush1.msra.mxu0 %v709
        %1969 = vmatprep.subr.mxu0 0.0
        %1970 = vmatpush1.msra.mxu0 %v708
        %1971 = vmatprep.subr.mxu0 0.0
        %1972 = vmatpush2.msra.mxu0 0.0
        %1973 = vmatprep.subr.mxu0 0.0
        %1974 = vmatpush2.msra.mxu0 0.0
        %1975 = vmatprep.subr.mxu0 0.0
        %1976 = vmatpush2.msra.mxu0 0.0
        %1977 = vmatprep.subr.mxu0 0.0
        %1978 = vmatpush2.msra.mxu0 0.0
        %1979 = vmatprep.subr.mxu0 0.0
        %1980 = vmatpush2.msra.mxu0 0.0
        %1981 = vmatprep.subr.mxu0 0.0
        %1982 = vmatpush2.msra.mxu0 0.0
        %1983 = vmatprep.subr.mxu0 0.0
        %1984 = vmatpush2.msra.mxu0 0.0
        %1985 = vmatprep.subr.mxu0 0.0
        %1986 = vmatpush2.msra.mxu0 0.0
        %1987 = vmatprep.subr.mxu0 0.0
        %1988 = vmatpush2.msra.mxu0 0.0
        %1989 = vmatprep.subr.mxu0 0.0
        %1990 = vmatpush2.msra.mxu0 0.0
        %1991 = vmatprep.subr.mxu0 0.0
        %1992 = vmatpush2.msra.mxu0 0.0
        %1993 = vmatprep.subr.mxu0 0.0
        %1994 = vmatpush2.msra.mxu0 0.0
        %1995 = vmatprep.subr.mxu0 0.0
        %1996 = vmatpush2.msra.mxu0 0.0
        %1997 = vmatprep.subr.mxu0 0.0
        %1998 = vmatpush2.msra.mxu0 0.0
        %1999 = vmatprep.subr.mxu0 0.0
        %2000 = vmatpush2.msra.mxu0 0.0
        %2001 = vmatprep.subr.mxu0 0.0
        %2002 = vmatpush2.msra.mxu0 0.0
        %2003 = vmatprep.mubr.f32.mxu0 0.0
        %2004 = vmatmul.mubr.f32.gmra.mxu0 %v1935
        %v2005 = vpop.f32.mrf.mxu0
        %v2006 = vadd.f32 %v739, %v2005
        %v2007 = vpop.f32.mrf.mxu0
        %2008 = vmatprep.mubr.f32.mxu0 0.0
        %2009 = vmatmul.mubr.f32.gmra.mxu0 %v1937
        %v2010 = vpop.f32.mrf.mxu0
        %v2011 = vadd.f32 %v739, %v2010
        %v2012 = vpop.f32.mrf.mxu0
        %2013 = vdwg.mxu0
        %v2014 = vtanh.pop %v2006
        %v2015 = vtanh.pop %v2011
        %2017 = vrot.lane.b32.xlu0 %v2015, 32
        %v2018 = vpop.permute.xlu0 %2017
        %v2020 = vsel %vm601, %v2014, %v2018
        %v2022 = vsel %vm688, %v2020, 0
        %2024 = vmatprep.subr.mxu0 0.0
        %2025 = vmatpush1.msra.mxu0 0.0
        %2026 = vmatprep.subr.mxu0 0.0
        %2027 = vmatpush1.msra.mxu0 0.0
        %2028 = vmatprep.subr.mxu0 0.0
        %2029 = vmatpush1.msra.mxu0 0.0
        %2030 = vmatprep.subr.mxu0 0.0
        %2031 = vmatpush1.msra.mxu0 0.0
        %2032 = vmatprep.subr.mxu0 0.0
        %2033 = vmatpush1.msra.mxu0 0.0
        %2034 = vmatprep.subr.mxu0 0.0
        %2035 = vmatpush1.msra.mxu0 0.0
        %2036 = vmatprep.subr.mxu0 0.0
        %2037 = vmatpush1.msra.mxu0 0.0
        %2038 = vmatprep.subr.mxu0 0.0
        %2039 = vmatpush1.msra.mxu0 0.0
        %2040 = vmatprep.subr.mxu0 0.0
        %2041 = vmatpush1.msra.mxu0 %v719
        %2042 = vmatprep.subr.mxu0 0.0
        %2043 = vmatpush1.msra.mxu0 %v718
        %2044 = vmatprep.subr.mxu0 0.0
        %2045 = vmatpush1.msra.mxu0 %v717
        %2046 = vmatprep.subr.mxu0 0.0
        %2047 = vmatpush1.msra.mxu0 %v716
        %2048 = vmatprep.subr.mxu0 0.0
        %2049 = vmatpush1.msra.mxu0 %v715
        %2050 = vmatprep.subr.mxu0 0.0
        %2051 = vmatpush1.msra.mxu0 %v714
        %2052 = vmatprep.subr.mxu0 0.0
        %2053 = vmatpush1.msra.mxu0 %v713
        %2054 = vmatprep.subr.mxu0 0.0
        %2055 = vmatpush1.msra.mxu0 %v712
        %2056 = vmatprep.subr.mxu0 0.0
        %2057 = vmatpush2.msra.mxu0 0.0
        %2058 = vmatprep.subr.mxu0 0.0
        %2059 = vmatpush2.msra.mxu0 0.0
        %2060 = vmatprep.subr.mxu0 0.0
        %2061 = vmatpush2.msra.mxu0 0.0
        %2062 = vmatprep.subr.mxu0 0.0
        %2063 = vmatpush2.msra.mxu0 0.0
        %2064 = vmatprep.subr.mxu0 0.0
        %2065 = vmatpush2.msra.mxu0 0.0
        %2066 = vmatprep.subr.mxu0 0.0
        %2067 = vmatpush2.msra.mxu0 0.0
        %2068 = vmatprep.subr.mxu0 0.0
        %2069 = vmatpush2.msra.mxu0 0.0
        %2070 = vmatprep.subr.mxu0 0.0
        %2071 = vmatpush2.msra.mxu0 0.0
        %2072 = vmatprep.subr.mxu0 0.0
        %2073 = vmatpush2.msra.mxu0 0.0
        %2074 = vmatprep.subr.mxu0 0.0
        %2075 = vmatpush2.msra.mxu0 0.0
        %2076 = vmatprep.subr.mxu0 0.0
        %2077 = vmatpush2.msra.mxu0 0.0
        %2078 = vmatprep.subr.mxu0 0.0
        %2079 = vmatpush2.msra.mxu0 0.0
        %2080 = vmatprep.subr.mxu0 0.0
        %2081 = vmatpush2.msra.mxu0 0.0
        %2082 = vmatprep.subr.mxu0 0.0
        %2083 = vmatpush2.msra.mxu0 0.0
        %2084 = vmatprep.subr.mxu0 0.0
        %2085 = vmatpush2.msra.mxu0 0.0
        %2086 = vmatprep.subr.mxu0 0.0
        %2087 = vmatpush2.msra.mxu0 0.0
        %2088 = vmatprep.mubr.f32.mxu0 0.0
        %2089 = vmatmul.mubr.f32.gmra.mxu0 %v2022
        %v2090 = vpop.f32.mrf.mxu0
        %v2091 = vadd.f32 %v753, %v2090
        %v2092 = vpop.f32.mrf.mxu0
        %2093 = vdwg.mxu0
        %v2094 = vxor.u32 %v2091, 2147483648
        %v2095 = vmul.f32 %v2094, 1.442695
        %v2096 = vpow.pop %v2095
        %v2097 = vadd.f32 %v2096, 1.0
        %v2098 = vrcp.pop %v2097
        %v2099 = vmul.f32 1.0, %v2098
        %v2100 = vtanh.pop %v2091
        %2102 = vrot.lane.b32.xlu0 %v2100, 32
        %v2103 = vpop.permute.xlu0 %2102
        %v2105 = vmul.f32 %v2099, %v2103
        %2106 = vrot.lane.b32.xlu0 %v1546, 32
        %v2107 = vpop.permute.xlu0 %2106
        %v2109 = vmul.f32 %v2099, %v2107
        %2111 = vrot.lane.b32.xlu0 %v2109, 96
        %v2112 = vpop.permute.xlu0 %2111
        %v2114 = vadd.f32 %v2105, %v2112
        %2115 = vrot.lane.b32.xlu0 %v1551, 64
        %v2116 = vpop.permute.xlu0 %2115
        %v2118 = vmul.f32 %v2099, %v2116
        %2120 = vrot.lane.b32.xlu0 %v2118, 64
        %v2121 = vpop.permute.xlu0 %2120
        %v2123 = vadd.f32 %v2114, %v2121
        %v2124 = vtanh.pop %v2123
        %2126 = vrot.lane.b32.xlu0 %v2124, 32
        %v2127 = vpop.permute.xlu0 %2126
        %v2129 = vsel %vm601, %v2123, %v2127
        %vm2130 = vcmp.ge.s32.totalorder %v764, 0
        %v2131 = vsel %vm2130, 1, 0
        %2132 = vset.pattern.permute.xlu0 0
        %2133 = vperm.xlu0 %2132, %v2131
        %v2134 = vpop.permute.xlu0 %2133
        %vm2135 = vcmp.eq.s32.totalorder %v2134, 1
        %v2136 = vsel %vm2135, %v2129, 0.0
        %2137 = vst.msk [vmem:[#allocation2 + $0x10] sm:$0xff] %vm688, %v2136
      $region96: #{_forward_groups.1} parent=87 // pred_fallthru
        _
      %v2138 = vld [vmem:[%s579] sm:$0x3]
      %2139 = vset.pattern.permute.xlu0 0
      %2140 = vperm.xlu0 %2139, %v2138
      %v2141 = vpop.permute.xlu0 %2140
      %vm2142 = vcmp.eq.s32.totalorder %v767, %v2141
      %v2143 = vsel %vm2142, 1, 0
      %v2144 = vcvt.s32.f32 %v2143
      %v2145 = vld [vmem:[#allocation2] sm:$0xff]
      %v2146 = vld [vmem:[#allocation2 + $0x8] sm:$0xff]
      %v2147 = vld [vmem:[#allocation2 + $0x10] sm:$0xff]
      %vm2148 = vcmask 195584
      %v2150 = vsel %vm2148, %v2144, 0
      %2152 = vmatprep.subr.mxu0 0.0
      %2153 = vmatpush1.msra.mxu0 0.0
      %2154 = vmatprep.subr.mxu0 0.0
      %2155 = vmatpush1.msra.mxu0 0.0
      %2156 = vmatprep.subr.mxu0 0.0
      %2157 = vmatpush1.msra.mxu0 0.0
      %2158 = vmatprep.subr.mxu0 0.0
      %2159 = vmatpush1.msra.mxu0 0.0
      %2160 = vmatprep.subr.mxu0 0.0
      %2161 = vmatpush1.msra.mxu0 0.0
      %2162 = vmatprep.subr.mxu0 0.0
      %2163 = vmatpush1.msra.mxu0 0.0
      %2164 = vmatprep.subr.mxu0 0.0
      %2165 = vmatpush1.msra.mxu0 0.0
      %2166 = vmatprep.subr.mxu0 0.0
      %2167 = vmatpush1.msra.mxu0 0.0
      %2168 = vmatprep.subr.mxu0 0.0
      %2169 = vmatpush1.msra.mxu0 0.0
      %2170 = vmatprep.subr.mxu0 0.0
      %2171 = vmatpush1.msra.mxu0 0.0
      %2172 = vmatprep.subr.mxu0 0.0
      %2173 = vmatpush1.msra.mxu0 0.0
      %2174 = vmatprep.subr.mxu0 0.0
      %2175 = vmatpush1.msra.mxu0 0.0
      %2176 = vmatprep.subr.mxu0 0.0
      %2177 = vmatpush1.msra.mxu0 0.0
      %2178 = vmatprep.subr.mxu0 0.0
      %2179 = vmatpush1.msra.mxu0 %v2147
      %2180 = vmatprep.subr.mxu0 0.0
      %2181 = vmatpush1.msra.mxu0 %v2146
      %2182 = vmatprep.subr.mxu0 0.0
      %2183 = vmatpush1.msra.mxu0 %v2145
      %2184 = vmatprep.subr.mxu0 0.0
      %2185 = vmatpush2.msra.mxu0 0.0
      %2186 = vmatprep.subr.mxu0 0.0
      %2187 = vmatpush2.msra.mxu0 0.0
      %2188 = vmatprep.subr.mxu0 0.0
      %2189 = vmatpush2.msra.mxu0 0.0
      %2190 = vmatprep.subr.mxu0 0.0
      %2191 = vmatpush2.msra.mxu0 0.0
      %2192 = vmatprep.subr.mxu0 0.0
      %2193 = vmatpush2.msra.mxu0 0.0
      %2194 = vmatprep.subr.mxu0 0.0
      %2195 = vmatpush2.msra.mxu0 0.0
      %2196 = vmatprep.subr.mxu0 0.0
      %2197 = vmatpush2.msra.mxu0 0.0
      %2198 = vmatprep.subr.mxu0 0.0
      %2199 = vmatpush2.msra.mxu0 0.0
      %2200 = vmatprep.subr.mxu0 0.0
      %2201 = vmatpush2.msra.mxu0 0.0
      %2202 = vmatprep.subr.mxu0 0.0
      %2203 = vmatpush2.msra.mxu0 0.0
      %2204 = vmatprep.subr.mxu0 0.0
      %2205 = vmatpush2.msra.mxu0 0.0
      %2206 = vmatprep.subr.mxu0 0.0
      %2207 = vmatpush2.msra.mxu0 0.0
      %2208 = vmatprep.subr.mxu0 0.0
      %2209 = vmatpush2.msra.mxu0 0.0
      %2210 = vmatprep.subr.mxu0 0.0
      %2211 = vmatpush2.msra.mxu0 0.0
      %2212 = vmatprep.subr.mxu0 0.0
      %2213 = vmatpush2.msra.mxu0 0.0
      %2214 = vmatprep.subr.mxu0 0.0
      %2215 = vmatpush2.msra.mxu0 0.0
      %2216 = vmatprep.mubr.f32.mxu0 0.0
      %2217 = vmatmul.mubr.f32.gmra.mxu0 %v2150
      %v2218 = vpop.f32.mrf.mxu0
      %v2219 = vadd.f32 0.0, %v2218
      %v2220 = vpop.f32.mrf.mxu0
      %2221 = vdwg.mxu0
      %vm2222 = vcmask 517120
      %2223 = vst.msk [vmem:[%s587] sm:$0x3] %vm2222, %v2219
      %p2224 = scmp.lt.s32.totalorder %s35, 1
      %s2225 = scalar_select %p2224, %s35, 1
      %s2226 = smul.addr %s2225, 2
      %s2227 = scalar_lea.vmem %s18, %s2226
      // Predicated region
      $region97: #{_forward_groups.1} parent=87 // pred_check
        %p2228 = pneg %p425
      $region98: #{_forward_groups.1} parent=87 // pred_check_branch
        %2230 = sbr.rel (%p2228) target = $region100
      $region99: #{_forward_groups.1} parent=87 // pred_region
        _
      $region100: #{_forward_groups.1} parent=87 // pred_fallthru
        _
    $region88: #{_forward_groups.1} parent=5 // pred_fallthru
      _
    %p2231 = scmp.le.s32.totalorder 2, %s30
    // Predicated region
    $region101: #{_forward_groups.1} parent=5 // pred_check
      %p2232 = pneg %p2231
    $region102: #{_forward_groups.1} parent=5 // pred_check_branch
      %2234 = sbr.rel (%p2232) target = $region104
    $region103: #{_forward_groups.1} parent=5 // pred_region
      %s2235 = ssub.s32 %s30, 2
      // Predicated region
      $region105: #{_forward_groups.1} parent=103 // pred_check
        %p2236 = pneg %p431
      $region106: #{_forward_groups.1} parent=103 // pred_check_branch
        %2238 = sbr.rel (%p2236) target = $region108
      $region107: #{_forward_groups.1} parent=103 // pred_region
        %p2239 = scmp.lt.s32.totalorder %s36, 1
        %s2240 = scalar_select %p2239, %s36, 1
        %s2241 = smul.addr %s2240, 2
        %s2242 = scalar_lea.vmem %s18, %s2241
      $region108: #{_forward_groups.1} parent=103 // pred_fallthru
        _
    $region104: #{_forward_groups.1} parent=5 // pred_fallthru
      _
  $region6: #{_forward_groups.1} parent=0 // loop_footer
    %s34 = sadd.s32 1, %s30
  $region7: #{_forward_groups.1} parent=0 // loop_footer_branch
    %29 = sbr.rel target = $region3
  $region8: #{_forward_groups.1} parent=0 // loop_exit
    _

</llo_original>
